<compile_context>
chip_gen: v6e
topology: v6e:2x2x1
jax: 0.10.0
libtpu: 0.0.40
codegen_flags: <defaults>
</compile_context>

<pallas_src>
import functools

import jax
import jax.numpy as jnp
from jax.experimental import pallas as pl
from jax.experimental.pallas import tpu as pltpu


def _pick_tc(C, H, W, itemsize, budget_bytes=8 * 1024 * 1024, max_unroll=32):
    """Largest divisor of C that keeps the double-buffered input chunk small."""
    plane = max(1, H * W * itemsize)
    cap = max(1, min(C, max_unroll, budget_bytes // (2 * plane)))
    for tc in range(int(cap), 0, -1):
        if C % tc == 0:
            return tc
    return 1


def _spatial_attention_kernel(x_ref, p_ref, o_ref, pad_ref, shift_ref,
                              *, K, P, TC, n_chunks):
    # x_ref:     (1, TC, H, W) VMEM      -- one channel chunk of one image
    # p_ref:     (2*K*K + 1,) f32 SMEM   -- conv taps [c,ky,kx] (ch-0 pre-scaled by 1/C) + bias
    # o_ref:     (1, 1, H, W) VMEM       -- output (written on last chunk)
    # pad_ref:   (2, H+2P, W+2P) f32 VMEM -- zero-bordered running sum / running max
    # shift_ref: (2*K, H+2P, W) f32 VMEM -- kx lane-shifted planes for the conv
    _, _, H, W = o_ref.shape
    c_idx = pl.program_id(1)

    # ---- fused channel pooling over this chunk (one pass per plane) ----
    x0 = x_ref[0, 0].astype(jnp.float32)
    csum = x0
    cmax = x0
    for c in range(1, TC):
        xc = x_ref[0, c].astype(jnp.float32)
        csum = csum + xc
        cmax = jnp.maximum(cmax, xc)

    def init():
        # Zero only the P-wide border, once per image (interior is overwritten).
        # Borders are never written elsewhere, so they stay zero for the conv.
        pad_ref[:, 0:P, :] = jnp.zeros((2, P, W + 2 * P), jnp.float32)
        pad_ref[:, P + H:2 * P + H, :] = jnp.zeros((2, P, W + 2 * P), jnp.float32)
        pad_ref[:, P:P + H, 0:P] = jnp.zeros((2, H, P), jnp.float32)
        pad_ref[:, P:P + H, P + W:2 * P + W] = jnp.zeros((2, H, P), jnp.float32)
        pad_ref[0, P:P + H, P:P + W] = csum
        pad_ref[1, P:P + H, P:P + W] = cmax

    def accumulate():
        pad_ref[0, P:P + H, P:P + W] = pad_ref[0, P:P + H, P:P + W] + csum
        pad_ref[1, P:P + H, P:P + W] = jnp.maximum(
            pad_ref[1, P:P + H, P:P + W], cmax)

    def conv_and_store():
        # Hoist the kx lane-shifts: 2*K shifted planes built once (14 lane shifts
        # total) and reused by all 7 ky rows.
        for c in range(2):
            for kx in range(K):
                shift_ref[c * K + kx] = pad_ref[c, :, kx:kx + W]
        # 2*K*K MACs; ky offsets are pure sublane addressing (no lane rotates).
        # Four partial accumulators expose ILP to the 4-slot VALU.
        accs = [jnp.zeros((H, W), jnp.float32) for _ in range(4)]
        for c in range(2):
            for kx in range(K):
                plane = c * K + kx
                for ky in range(K):
                    tap = p_ref[c * K * K + ky * K + kx]        # SMEM scalar
                    a = 2 * c + (ky & 1)
                    accs[a] = accs[a] + shift_ref[plane, ky:ky + H, :] * tap
        out = (accs[0] + accs[1]) + (accs[2] + accs[3]) + p_ref[2 * K * K]
        # NOTE: W=16 here means masked (non lane-dense) stores; production shapes
        # should keep W a multiple of 128 for full lane utilization.
        o_ref[...] = out.reshape(o_ref.shape).astype(o_ref.dtype)

    if n_chunks == 1:
        init()
        conv_and_store()
    else:
        pl.when(c_idx == 0)(init)
        pl.when(c_idx > 0)(accumulate)
        pl.when(c_idx == n_chunks - 1)(conv_and_store)


def spatial_attention(x, conv_w, conv_b):
    """x: (N, C, H, W); conv_w: (1, 2, 7, 7); conv_b: (1,). Returns (N, 1, H, W)."""
    N, C, H, W = x.shape
    K = 7
    P = K // 2

    itemsize = x.dtype.itemsize
    TC = _pick_tc(C, H, W, itemsize)
    n_chunks = C // TC

    # Fold the channel-mean's 1/C into the channel-0 taps (conv is linear), so the
    # kernel only keeps a running channel sum.
    w = conv_w.reshape(2, K, K).astype(jnp.float32)
    w = w.at[0].multiply(1.0 / C)
    params = jnp.concatenate(
        [w.reshape(-1), conv_b.reshape(-1).astype(jnp.float32)])   # (2*K*K + 1,)

    kernel = functools.partial(_spatial_attention_kernel,
                               K=K, P=P, TC=TC, n_chunks=n_chunks)

    # Advisory cost estimate: pooling (add+max per channel) + 98-tap conv.
    flops = int(N * H * W * (2 * C + 4 * K * K))
    bytes_accessed = int(x.size * itemsize + N * H * W * itemsize + params.size * 4)

    # Explicit scoped-VMEM budget (v5e default is only 16 MiB).
    vmem_need = (2 * TC * H * W * itemsize                # double-buffered input
                 + 2 * H * W * itemsize                   # double-buffered output
                 + 2 * (H + 2 * P) * (W + 2 * P) * 4      # padded pooled maps
                 + 2 * K * (H + 2 * P) * W * 4)           # shifted planes
    vmem_limit = int(min(max(32 * 1024 * 1024, 2 * vmem_need), 48 * 1024 * 1024))

    return pl.pallas_call(
        kernel,
        out_shape=jax.ShapeDtypeStruct((N, 1, H, W), x.dtype),
        grid_spec=pltpu.PrefetchScalarGridSpec(
            num_scalar_prefetch=0,
            grid=(N, n_chunks),
            in_specs=[
                pl.BlockSpec((1, TC, H, W), lambda n, c: (n, c, 0, 0)),
                pl.BlockSpec(memory_space=pltpu.MemorySpace.SMEM),
            ],
            out_specs=pl.BlockSpec((1, 1, H, W), lambda n, c: (n, 0, 0, 0)),
            scratch_shapes=[
                pltpu.VMEM((2, H + 2 * P, W + 2 * P), jnp.float32),
                pltpu.VMEM((2 * K, H + 2 * P, W), jnp.float32),
            ],
        ),
        compiler_params=pltpu.CompilerParams(
            dimension_semantics=("parallel", "arbitrary"),
            vmem_limit_bytes=vmem_limit),
        cost_estimate=pl.CostEstimate(
            flops=flops, transcendentals=0, bytes_accessed=bytes_accessed),
    )(x, params)


def reference(x, conv_w, conv_b):
    # Pure-JAX reference of the PyTorch forward (NCHW, cross-correlation).
    xf = x.astype(jnp.float32)
    avg = jnp.mean(xf, axis=1, keepdims=True)
    mx = jnp.max(xf, axis=1, keepdims=True)
    pooled = jnp.concatenate([avg, mx], axis=1)               # (N, 2, H, W)
    out = jax.lax.conv_general_dilated(
        pooled, conv_w.astype(jnp.float32),
        window_strides=(1, 1), padding=((3, 3), (3, 3)),
        dimension_numbers=("NCHW", "OIHW", "NCHW"))
    return (out + conv_b.reshape(1, 1, 1, 1)).astype(x.dtype)


if __name__ == "__main__":
    N, C, H, W = 2, 4, 16, 16
    key = jax.random.PRNGKey(0)
    k_x, k_w, k_b = jax.random.split(key, 3)

    x = jax.random.normal(k_x, (N, C, H, W), dtype=jnp.float32)
    # deterministic synthetic Conv2d(2, 1, kernel_size=7, padding=3) parameters
    fan_in = 2 * 7 * 7
    bound = 1.0 / (fan_in ** 0.5)
    conv_w = jax.random.uniform(k_w, (1, 2, 7, 7), minval=-bound, maxval=bound,
                                dtype=jnp.float32)
    conv_b = jax.random.uniform(k_b, (1,), minval=-bound, maxval=bound,
                                dtype=jnp.float32)

    out = spatial_attention(x, conv_w, conv_b)
    out = jax.block_until_ready(out)

    ref = reference(x, conv_w, conv_b)
    assert out.shape == (N, 1, H, W)
    err = float(jnp.max(jnp.abs(out.astype(jnp.float32) - ref.astype(jnp.float32))))
    assert err < 1e-4, err
    print("KERNEL_OK")
</pallas_src>

<mosaic_0001>
module attributes {stable_mosaic.version = 11 : i64} {
  func.func @_spatial_attention_kernel(%arg0: i32, %arg1: i32, %arg2: memref<1x4x16x16xf32, #tpu.memory_space<vmem>>, %arg3: memref<99xf32, #tpu.memory_space<smem>>, %arg4: memref<1x1x16x16xf32, #tpu.memory_space<vmem>>, %arg5: memref<2x22x22xf32, #tpu.memory_space<vmem>>, %arg6: memref<14x22x16xf32, #tpu.memory_space<vmem>>) attributes {dimension_semantics = [#tpu.dimension_semantics<parallel>, #tpu.dimension_semantics<arbitrary>], iteration_bounds = array<i64: 2, 1>, scalar_prefetch = 0 : i64, scratch_operands = 2 : i64, tpu.core_type = #tpu.core_type<tc>, window_params = [{transform_indices = @transform_0, window_bounds = array<i64: 1, 4, 16, 16>}, {transform_indices = @transform_1, window_bounds = array<i64: 99>}, {transform_indices = @transform_2, window_bounds = array<i64: 1, 1, 16, 16>}]} {
    %c0 = arith.constant 0 : index
    %c0_0 = arith.constant 0 : index
    %c0_1 = arith.constant 0 : index
    %c0_2 = arith.constant 0 : index
    %0 = vector.load %arg2[%c0, %c0_0, %c0_1, %c0_2] : memref<1x4x16x16xf32, #tpu.memory_space<vmem>>, vector<1x1x16x16xf32>
    %1 = vector.shape_cast %0 : vector<1x1x16x16xf32> to vector<16x16xf32>
    %c0_3 = arith.constant 0 : index
    %c1 = arith.constant 1 : index
    %c0_4 = arith.constant 0 : index
    %c0_5 = arith.constant 0 : index
    %2 = vector.load %arg2[%c0_3, %c1, %c0_4, %c0_5] : memref<1x4x16x16xf32, #tpu.memory_space<vmem>>, vector<1x1x16x16xf32>
    %3 = vector.shape_cast %2 : vector<1x1x16x16xf32> to vector<16x16xf32>
    %4 = arith.addf %1, %3 : vector<16x16xf32>
    %5 = arith.maximumf %1, %3 : vector<16x16xf32>
    %c0_6 = arith.constant 0 : index
    %c2 = arith.constant 2 : index
    %c0_7 = arith.constant 0 : index
    %c0_8 = arith.constant 0 : index
    %6 = vector.load %arg2[%c0_6, %c2, %c0_7, %c0_8] : memref<1x4x16x16xf32, #tpu.memory_space<vmem>>, vector<1x1x16x16xf32>
    %7 = vector.shape_cast %6 : vector<1x1x16x16xf32> to vector<16x16xf32>
    %8 = arith.addf %4, %7 : vector<16x16xf32>
    %9 = arith.maximumf %5, %7 : vector<16x16xf32>
    %c0_9 = arith.constant 0 : index
    %c3 = arith.constant 3 : index
    %c0_10 = arith.constant 0 : index
    %c0_11 = arith.constant 0 : index
    %10 = vector.load %arg2[%c0_9, %c3, %c0_10, %c0_11] : memref<1x4x16x16xf32, #tpu.memory_space<vmem>>, vector<1x1x16x16xf32>
    %11 = vector.shape_cast %10 : vector<1x1x16x16xf32> to vector<16x16xf32>
    %12 = arith.addf %8, %11 : vector<16x16xf32>
    %13 = arith.maximumf %9, %11 : vector<16x16xf32>
    %cst = arith.constant 0.000000e+00 : f32
    %14 = vector.broadcast %cst : f32 to vector<2x3x22xf32>
    %c0_12 = arith.constant 0 : index
    %c0_13 = arith.constant 0 : index
    %c0_14 = arith.constant 0 : index
    %15 = vector.load %arg5[%c0_12, %c0_13, %c0_14] : memref<2x22x22xf32, #tpu.memory_space<vmem>>, vector<2x3x22xf32>
    tpu.vector_store %arg5[%c0_12, %c0_13, %c0_14], %14 {strides = array<i32>} : memref<2x22x22xf32, #tpu.memory_space<vmem>>, vector<2x3x22xf32>,
    %cst_15 = arith.constant 0.000000e+00 : f32
    %16 = vector.broadcast %cst_15 : f32 to vector<2x3x22xf32>
    %c0_16 = arith.constant 0 : index
    %c19 = arith.constant 19 : index
    %c0_17 = arith.constant 0 : index
    %17 = vector.load %arg5[%c0_16, %c19, %c0_17] : memref<2x22x22xf32, #tpu.memory_space<vmem>>, vector<2x3x22xf32>
    tpu.vector_store %arg5[%c0_16, %c19, %c0_17], %16 {strides = array<i32>} : memref<2x22x22xf32, #tpu.memory_space<vmem>>, vector<2x3x22xf32>,
    %cst_18 = arith.constant 0.000000e+00 : f32
    %18 = vector.broadcast %cst_18 : f32 to vector<2x16x3xf32>
    %c0_19 = arith.constant 0 : index
    %c3_20 = arith.constant 3 : index
    %c0_21 = arith.constant 0 : index
    %19 = vector.load %arg5[%c0_19, %c3_20, %c0_21] : memref<2x22x22xf32, #tpu.memory_space<vmem>>, vector<2x16x3xf32>
    tpu.vector_store %arg5[%c0_19, %c3_20, %c0_21], %18 {strides = array<i32>} : memref<2x22x22xf32, #tpu.memory_space<vmem>>, vector<2x16x3xf32>,
    %cst_22 = arith.constant 0.000000e+00 : f32
    %20 = vector.broadcast %cst_22 : f32 to vector<2x16x3xf32>
    %c0_23 = arith.constant 0 : index
    %c3_24 = arith.constant 3 : index
    %c19_25 = arith.constant 19 : index
    %21 = vector.load %arg5[%c0_23, %c3_24, %c19_25] : memref<2x22x22xf32, #tpu.memory_space<vmem>>, vector<2x16x3xf32>
    tpu.vector_store %arg5[%c0_23, %c3_24, %c19_25], %20 {strides = array<i32>} : memref<2x22x22xf32, #tpu.memory_space<vmem>>, vector<2x16x3xf32>,
    %c0_26 = arith.constant 0 : index
    %c3_27 = arith.constant 3 : index
    %c3_28 = arith.constant 3 : index
    %22 = vector.load %arg5[%c0_26, %c3_27, %c3_28] : memref<2x22x22xf32, #tpu.memory_space<vmem>>, vector<1x16x16xf32>
    %23 = vector.shape_cast %22 : vector<1x16x16xf32> to vector<16x16xf32>
    %24 = vector.shape_cast %12 : vector<16x16xf32> to vector<1x16x16xf32>
    tpu.vector_store %arg5[%c0_26, %c3_27, %c3_28], %24 {strides = array<i32>} : memref<2x22x22xf32, #tpu.memory_space<vmem>>, vector<1x16x16xf32>,
    %c1_29 = arith.constant 1 : index
    %c3_30 = arith.constant 3 : index
    %c3_31 = arith.constant 3 : index
    %25 = vector.load %arg5[%c1_29, %c3_30, %c3_31] : memref<2x22x22xf32, #tpu.memory_space<vmem>>, vector<1x16x16xf32>
    %26 = vector.shape_cast %25 : vector<1x16x16xf32> to vector<16x16xf32>
    %27 = vector.shape_cast %13 : vector<16x16xf32> to vector<1x16x16xf32>
    tpu.vector_store %arg5[%c1_29, %c3_30, %c3_31], %27 {strides = array<i32>} : memref<2x22x22xf32, #tpu.memory_space<vmem>>, vector<1x16x16xf32>,
    %c0_32 = arith.constant 0 : index
    %c0_33 = arith.constant 0 : index
    %c0_34 = arith.constant 0 : index
    %28 = vector.load %arg5[%c0_32, %c0_33, %c0_34] : memref<2x22x22xf32, #tpu.memory_space<vmem>>, vector<1x22x16xf32>
    %29 = vector.shape_cast %28 : vector<1x22x16xf32> to vector<22x16xf32>
    %c0_35 = arith.constant 0 : index
    %c0_36 = arith.constant 0 : index
    %c0_37 = arith.constant 0 : index
    %30 = vector.load %arg6[%c0_35, %c0_36, %c0_37] : memref<14x22x16xf32, #tpu.memory_space<vmem>>, vector<1x22x16xf32>
    %31 = vector.shape_cast %30 : vector<1x22x16xf32> to vector<22x16xf32>
    %32 = vector.shape_cast %29 : vector<22x16xf32> to vector<1x22x16xf32>
    tpu.vector_store %arg6[%c0_35, %c0_36, %c0_37], %32 {strides = array<i32>} : memref<14x22x16xf32, #tpu.memory_space<vmem>>, vector<1x22x16xf32>,
    %c0_38 = arith.constant 0 : index
    %c0_39 = arith.constant 0 : index
    %c1_40 = arith.constant 1 : index
    %33 = vector.load %arg5[%c0_38, %c0_39, %c1_40] : memref<2x22x22xf32, #tpu.memory_space<vmem>>, vector<1x22x16xf32>
    %34 = vector.shape_cast %33 : vector<1x22x16xf32> to vector<22x16xf32>
    %c1_41 = arith.constant 1 : index
    %c0_42 = arith.constant 0 : index
    %c0_43 = arith.constant 0 : index
    %35 = vector.load %arg6[%c1_41, %c0_42, %c0_43] : memref<14x22x16xf32, #tpu.memory_space<vmem>>, vector<1x22x16xf32>
    %36 = vector.shape_cast %35 : vector<1x22x16xf32> to vector<22x16xf32>
    %37 = vector.shape_cast %34 : vector<22x16xf32> to vector<1x22x16xf32>
    tpu.vector_store %arg6[%c1_41, %c0_42, %c0_43], %37 {strides = array<i32>} : memref<14x22x16xf32, #tpu.memory_space<vmem>>, vector<1x22x16xf32>,
    %c0_44 = arith.constant 0 : index
    %c0_45 = arith.constant 0 : index
    %c2_46 = arith.constant 2 : index
    %38 = vector.load %arg5[%c0_44, %c0_45, %c2_46] : memref<2x22x22xf32, #tpu.memory_space<vmem>>, vector<1x22x16xf32>
    %39 = vector.shape_cast %38 : vector<1x22x16xf32> to vector<22x16xf32>
    %c2_47 = arith.constant 2 : index
    %c0_48 = arith.constant 0 : index
    %c0_49 = arith.constant 0 : index
    %40 = vector.load %arg6[%c2_47, %c0_48, %c0_49] : memref<14x22x16xf32, #tpu.memory_space<vmem>>, vector<1x22x16xf32>
    %41 = vector.shape_cast %40 : vector<1x22x16xf32> to vector<22x16xf32>
    %42 = vector.shape_cast %39 : vector<22x16xf32> to vector<1x22x16xf32>
    tpu.vector_store %arg6[%c2_47, %c0_48, %c0_49], %42 {strides = array<i32>} : memref<14x22x16xf32, #tpu.memory_space<vmem>>, vector<1x22x16xf32>,
    %c0_50 = arith.constant 0 : index
    %c0_51 = arith.constant 0 : index
    %c3_52 = arith.constant 3 : index
    %43 = vector.load %arg5[%c0_50, %c0_51, %c3_52] : memref<2x22x22xf32, #tpu.memory_space<vmem>>, vector<1x22x16xf32>
    %44 = vector.shape_cast %43 : vector<1x22x16xf32> to vector<22x16xf32>
    %c3_53 = arith.constant 3 : index
    %c0_54 = arith.constant 0 : index
    %c0_55 = arith.constant 0 : index
    %45 = vector.load %arg6[%c3_53, %c0_54, %c0_55] : memref<14x22x16xf32, #tpu.memory_space<vmem>>, vector<1x22x16xf32>
    %46 = vector.shape_cast %45 : vector<1x22x16xf32> to vector<22x16xf32>
    %47 = vector.shape_cast %44 : vector<22x16xf32> to vector<1x22x16xf32>
    tpu.vector_store %arg6[%c3_53, %c0_54, %c0_55], %47 {strides = array<i32>} : memref<14x22x16xf32, #tpu.memory_space<vmem>>, vector<1x22x16xf32>,
    %c0_56 = arith.constant 0 : index
    %c0_57 = arith.constant 0 : index
    %c4 = arith.constant 4 : index
    %48 = vector.load %arg5[%c0_56, %c0_57, %c4] : memref<2x22x22xf32, #tpu.memory_space<vmem>>, vector<1x22x16xf32>
    %49 = vector.shape_cast %48 : vector<1x22x16xf32> to vector<22x16xf32>
    %c4_58 = arith.constant 4 : index
    %c0_59 = arith.constant 0 : index
    %c0_60 = arith.constant 0 : index
    %50 = vector.load %arg6[%c4_58, %c0_59, %c0_60] : memref<14x22x16xf32, #tpu.memory_space<vmem>>, vector<1x22x16xf32>
    %51 = vector.shape_cast %50 : vector<1x22x16xf32> to vector<22x16xf32>
    %52 = vector.shape_cast %49 : vector<22x16xf32> to vector<1x22x16xf32>
    tpu.vector_store %arg6[%c4_58, %c0_59, %c0_60], %52 {strides = array<i32>} : memref<14x22x16xf32, #tpu.memory_space<vmem>>, vector<1x22x16xf32>,
    %c0_61 = arith.constant 0 : index
    %c0_62 = arith.constant 0 : index
    %c5 = arith.constant 5 : index
    %53 = vector.load %arg5[%c0_61, %c0_62, %c5] : memref<2x22x22xf32, #tpu.memory_space<vmem>>, vector<1x22x16xf32>
    %54 = vector.shape_cast %53 : vector<1x22x16xf32> to vector<22x16xf32>
    %c5_63 = arith.constant 5 : index
    %c0_64 = arith.constant 0 : index
    %c0_65 = arith.constant 0 : index
    %55 = vector.load %arg6[%c5_63, %c0_64, %c0_65] : memref<14x22x16xf32, #tpu.memory_space<vmem>>, vector<1x22x16xf32>
    %56 = vector.shape_cast %55 : vector<1x22x16xf32> to vector<22x16xf32>
    %57 = vector.shape_cast %54 : vector<22x16xf32> to vector<1x22x16xf32>
    tpu.vector_store %arg6[%c5_63, %c0_64, %c0_65], %57 {strides = array<i32>} : memref<14x22x16xf32, #tpu.memory_space<vmem>>, vector<1x22x16xf32>,
    %c0_66 = arith.constant 0 : index
    %c0_67 = arith.constant 0 : index
    %c6 = arith.constant 6 : index
    %58 = vector.load %arg5[%c0_66, %c0_67, %c6] : memref<2x22x22xf32, #tpu.memory_space<vmem>>, vector<1x22x16xf32>
    %59 = vector.shape_cast %58 : vector<1x22x16xf32> to vector<22x16xf32>
    %c6_68 = arith.constant 6 : index
    %c0_69 = arith.constant 0 : index
    %c0_70 = arith.constant 0 : index
    %60 = vector.load %arg6[%c6_68, %c0_69, %c0_70] : memref<14x22x16xf32, #tpu.memory_space<vmem>>, vector<1x22x16xf32>
    %61 = vector.shape_cast %60 : vector<1x22x16xf32> to vector<22x16xf32>
    %62 = vector.shape_cast %59 : vector<22x16xf32> to vector<1x22x16xf32>
    tpu.vector_store %arg6[%c6_68, %c0_69, %c0_70], %62 {strides = array<i32>} : memref<14x22x16xf32, #tpu.memory_space<vmem>>, vector<1x22x16xf32>,
    %c1_71 = arith.constant 1 : index
    %c0_72 = arith.constant 0 : index
    %c0_73 = arith.constant 0 : index
    %63 = vector.load %arg5[%c1_71, %c0_72, %c0_73] : memref<2x22x22xf32, #tpu.memory_space<vmem>>, vector<1x22x16xf32>
    %64 = vector.shape_cast %63 : vector<1x22x16xf32> to vector<22x16xf32>
    %c7 = arith.constant 7 : index
    %c0_74 = arith.constant 0 : index
    %c0_75 = arith.constant 0 : index
    %65 = vector.load %arg6[%c7, %c0_74, %c0_75] : memref<14x22x16xf32, #tpu.memory_space<vmem>>, vector<1x22x16xf32>
    %66 = vector.shape_cast %65 : vector<1x22x16xf32> to vector<22x16xf32>
    %67 = vector.shape_cast %64 : vector<22x16xf32> to vector<1x22x16xf32>
    tpu.vector_store %arg6[%c7, %c0_74, %c0_75], %67 {strides = array<i32>} : memref<14x22x16xf32, #tpu.memory_space<vmem>>, vector<1x22x16xf32>,
    %c1_76 = arith.constant 1 : index
    %c0_77 = arith.constant 0 : index
    %c1_78 = arith.constant 1 : index
    %68 = vector.load %arg5[%c1_76, %c0_77, %c1_78] : memref<2x22x22xf32, #tpu.memory_space<vmem>>, vector<1x22x16xf32>
    %69 = vector.shape_cast %68 : vector<1x22x16xf32> to vector<22x16xf32>
    %c8 = arith.constant 8 : index
    %c0_79 = arith.constant 0 : index
    %c0_80 = arith.constant 0 : index
    %70 = vector.load %arg6[%c8, %c0_79, %c0_80] : memref<14x22x16xf32, #tpu.memory_space<vmem>>, vector<1x22x16xf32>
    %71 = vector.shape_cast %70 : vector<1x22x16xf32> to vector<22x16xf32>
    %72 = vector.shape_cast %69 : vector<22x16xf32> to vector<1x22x16xf32>
    tpu.vector_store %arg6[%c8, %c0_79, %c0_80], %72 {strides = array<i32>} : memref<14x22x16xf32, #tpu.memory_space<vmem>>, vector<1x22x16xf32>,
    %c1_81 = arith.constant 1 : index
    %c0_82 = arith.constant 0 : index
    %c2_83 = arith.constant 2 : index
    %73 = vector.load %arg5[%c1_81, %c0_82, %c2_83] : memref<2x22x22xf32, #tpu.memory_space<vmem>>, vector<1x22x16xf32>
    %74 = vector.shape_cast %73 : vector<1x22x16xf32> to vector<22x16xf32>
    %c9 = arith.constant 9 : index
    %c0_84 = arith.constant 0 : index
    %c0_85 = arith.constant 0 : index
    %75 = vector.load %arg6[%c9, %c0_84, %c0_85] : memref<14x22x16xf32, #tpu.memory_space<vmem>>, vector<1x22x16xf32>
    %76 = vector.shape_cast %75 : vector<1x22x16xf32> to vector<22x16xf32>
    %77 = vector.shape_cast %74 : vector<22x16xf32> to vector<1x22x16xf32>
    tpu.vector_store %arg6[%c9, %c0_84, %c0_85], %77 {strides = array<i32>} : memref<14x22x16xf32, #tpu.memory_space<vmem>>, vector<1x22x16xf32>,
    %c1_86 = arith.constant 1 : index
    %c0_87 = arith.constant 0 : index
    %c3_88 = arith.constant 3 : index
    %78 = vector.load %arg5[%c1_86, %c0_87, %c3_88] : memref<2x22x22xf32, #tpu.memory_space<vmem>>, vector<1x22x16xf32>
    %79 = vector.shape_cast %78 : vector<1x22x16xf32> to vector<22x16xf32>
    %c10 = arith.constant 10 : index
    %c0_89 = arith.constant 0 : index
    %c0_90 = arith.constant 0 : index
    %80 = vector.load %arg6[%c10, %c0_89, %c0_90] : memref<14x22x16xf32, #tpu.memory_space<vmem>>, vector<1x22x16xf32>
    %81 = vector.shape_cast %80 : vector<1x22x16xf32> to vector<22x16xf32>
    %82 = vector.shape_cast %79 : vector<22x16xf32> to vector<1x22x16xf32>
    tpu.vector_store %arg6[%c10, %c0_89, %c0_90], %82 {strides = array<i32>} : memref<14x22x16xf32, #tpu.memory_space<vmem>>, vector<1x22x16xf32>,
    %c1_91 = arith.constant 1 : index
    %c0_92 = arith.constant 0 : index
    %c4_93 = arith.constant 4 : index
    %83 = vector.load %arg5[%c1_91, %c0_92, %c4_93] : memref<2x22x22xf32, #tpu.memory_space<vmem>>, vector<1x22x16xf32>
    %84 = vector.shape_cast %83 : vector<1x22x16xf32> to vector<22x16xf32>
    %c11 = arith.constant 11 : index
    %c0_94 = arith.constant 0 : index
    %c0_95 = arith.constant 0 : index
    %85 = vector.load %arg6[%c11, %c0_94, %c0_95] : memref<14x22x16xf32, #tpu.memory_space<vmem>>, vector<1x22x16xf32>
    %86 = vector.shape_cast %85 : vector<1x22x16xf32> to vector<22x16xf32>
    %87 = vector.shape_cast %84 : vector<22x16xf32> to vector<1x22x16xf32>
    tpu.vector_store %arg6[%c11, %c0_94, %c0_95], %87 {strides = array<i32>} : memref<14x22x16xf32, #tpu.memory_space<vmem>>, vector<1x22x16xf32>,
    %c1_96 = arith.constant 1 : index
    %c0_97 = arith.constant 0 : index
    %c5_98 = arith.constant 5 : index
    %88 = vector.load %arg5[%c1_96, %c0_97, %c5_98] : memref<2x22x22xf32, #tpu.memory_space<vmem>>, vector<1x22x16xf32>
    %89 = vector.shape_cast %88 : vector<1x22x16xf32> to vector<22x16xf32>
    %c12 = arith.constant 12 : index
    %c0_99 = arith.constant 0 : index
    %c0_100 = arith.constant 0 : index
    %90 = vector.load %arg6[%c12, %c0_99, %c0_100] : memref<14x22x16xf32, #tpu.memory_space<vmem>>, vector<1x22x16xf32>
    %91 = vector.shape_cast %90 : vector<1x22x16xf32> to vector<22x16xf32>
    %92 = vector.shape_cast %89 : vector<22x16xf32> to vector<1x22x16xf32>
    tpu.vector_store %arg6[%c12, %c0_99, %c0_100], %92 {strides = array<i32>} : memref<14x22x16xf32, #tpu.memory_space<vmem>>, vector<1x22x16xf32>,
    %c1_101 = arith.constant 1 : index
    %c0_102 = arith.constant 0 : index
    %c6_103 = arith.constant 6 : index
    %93 = vector.load %arg5[%c1_101, %c0_102, %c6_103] : memref<2x22x22xf32, #tpu.memory_space<vmem>>, vector<1x22x16xf32>
    %94 = vector.shape_cast %93 : vector<1x22x16xf32> to vector<22x16xf32>
    %c13 = arith.constant 13 : index
    %c0_104 = arith.constant 0 : index
    %c0_105 = arith.constant 0 : index
    %95 = vector.load %arg6[%c13, %c0_104, %c0_105] : memref<14x22x16xf32, #tpu.memory_space<vmem>>, vector<1x22x16xf32>
    %96 = vector.shape_cast %95 : vector<1x22x16xf32> to vector<22x16xf32>
    %97 = vector.shape_cast %94 : vector<22x16xf32> to vector<1x22x16xf32>
    tpu.vector_store %arg6[%c13, %c0_104, %c0_105], %97 {strides = array<i32>} : memref<14x22x16xf32, #tpu.memory_space<vmem>>, vector<1x22x16xf32>,
    %cst_106 = arith.constant 0.000000e+00 : f32
    %98 = vector.broadcast %cst_106 : f32 to vector<16x16xf32>
    %cst_107 = arith.constant 0.000000e+00 : f32
    %99 = vector.broadcast %cst_107 : f32 to vector<16x16xf32>
    %cst_108 = arith.constant 0.000000e+00 : f32
    %100 = vector.broadcast %cst_108 : f32 to vector<16x16xf32>
    %cst_109 = arith.constant 0.000000e+00 : f32
    %101 = vector.broadcast %cst_109 : f32 to vector<16x16xf32>
    %c0_110 = arith.constant 0 : index
    %102 = memref.load %arg3[%c0_110] : memref<99xf32, #tpu.memory_space<smem>>
    %c0_111 = arith.constant 0 : index
    %c0_112 = arith.constant 0 : index
    %c0_113 = arith.constant 0 : index
    %103 = vector.load %arg6[%c0_111, %c0_112, %c0_113] : memref<14x22x16xf32, #tpu.memory_space<vmem>>, vector<1x16x16xf32>
    %104 = vector.shape_cast %103 : vector<1x16x16xf32> to vector<16x16xf32>
    %105 = vector.broadcast %102 : f32 to vector<16x16xf32>
    %106 = arith.mulf %104, %105 : vector<16x16xf32>
    %107 = arith.addf %98, %106 : vector<16x16xf32>
    %c7_114 = arith.constant 7 : index
    %108 = memref.load %arg3[%c7_114] : memref<99xf32, #tpu.memory_space<smem>>
    %c0_115 = arith.constant 0 : index
    %c1_116 = arith.constant 1 : index
    %c0_117 = arith.constant 0 : index
    %109 = vector.load %arg6[%c0_115, %c1_116, %c0_117] : memref<14x22x16xf32, #tpu.memory_space<vmem>>, vector<1x16x16xf32>
    %110 = vector.shape_cast %109 : vector<1x16x16xf32> to vector<16x16xf32>
    %111 = vector.broadcast %108 : f32 to vector<16x16xf32>
    %112 = arith.mulf %110, %111 : vector<16x16xf32>
    %113 = arith.addf %99, %112 : vector<16x16xf32>
    %c14 = arith.constant 14 : index
    %114 = memref.load %arg3[%c14] : memref<99xf32, #tpu.memory_space<smem>>
    %c0_118 = arith.constant 0 : index
    %c2_119 = arith.constant 2 : index
    %c0_120 = arith.constant 0 : index
    %115 = vector.load %arg6[%c0_118, %c2_119, %c0_120] : memref<14x22x16xf32, #tpu.memory_space<vmem>>, vector<1x16x16xf32>
    %116 = vector.shape_cast %115 : vector<1x16x16xf32> to vector<16x16xf32>
    %117 = vector.broadcast %114 : f32 to vector<16x16xf32>
    %118 = arith.mulf %116, %117 : vector<16x16xf32>
    %119 = arith.addf %107, %118 : vector<16x16xf32>
    %c21 = arith.constant 21 : index
    %120 = memref.load %arg3[%c21] : memref<99xf32, #tpu.memory_space<smem>>
    %c0_121 = arith.constant 0 : index
    %c3_122 = arith.constant 3 : index
    %c0_123 = arith.constant 0 : index
    %121 = vector.load %arg6[%c0_121, %c3_122, %c0_123] : memref<14x22x16xf32, #tpu.memory_space<vmem>>, vector<1x16x16xf32>
    %122 = vector.shape_cast %121 : vector<1x16x16xf32> to vector<16x16xf32>
    %123 = vector.broadcast %120 : f32 to vector<16x16xf32>
    %124 = arith.mulf %122, %123 : vector<16x16xf32>
    %125 = arith.addf %113, %124 : vector<16x16xf32>
    %c28 = arith.constant 28 : index
    %126 = memref.load %arg3[%c28] : memref<99xf32, #tpu.memory_space<smem>>
    %c0_124 = arith.constant 0 : index
    %c4_125 = arith.constant 4 : index
    %c0_126 = arith.constant 0 : index
    %127 = vector.load %arg6[%c0_124, %c4_125, %c0_126] : memref<14x22x16xf32, #tpu.memory_space<vmem>>, vector<1x16x16xf32>
    %128 = vector.shape_cast %127 : vector<1x16x16xf32> to vector<16x16xf32>
    %129 = vector.broadcast %126 : f32 to vector<16x16xf32>
    %130 = arith.mulf %128, %129 : vector<16x16xf32>
    %131 = arith.addf %119, %130 : vector<16x16xf32>
    %c35 = arith.constant 35 : index
    %132 = memref.load %arg3[%c35] : memref<99xf32, #tpu.memory_space<smem>>
    %c0_127 = arith.constant 0 : index
    %c5_128 = arith.constant 5 : index
    %c0_129 = arith.constant 0 : index
    %133 = vector.load %arg6[%c0_127, %c5_128, %c0_129] : memref<14x22x16xf32, #tpu.memory_space<vmem>>, vector<1x16x16xf32>
    %134 = vector.shape_cast %133 : vector<1x16x16xf32> to vector<16x16xf32>
    %135 = vector.broadcast %132 : f32 to vector<16x16xf32>
    %136 = arith.mulf %134, %135 : vector<16x16xf32>
    %137 = arith.addf %125, %136 : vector<16x16xf32>
    %c42 = arith.constant 42 : index
    %138 = memref.load %arg3[%c42] : memref<99xf32, #tpu.memory_space<smem>>
    %c0_130 = arith.constant 0 : index
    %c6_131 = arith.constant 6 : index
    %c0_132 = arith.constant 0 : index
    %139 = vector.load %arg6[%c0_130, %c6_131, %c0_132] : memref<14x22x16xf32, #tpu.memory_space<vmem>>, vector<1x16x16xf32>
    %140 = vector.shape_cast %139 : vector<1x16x16xf32> to vector<16x16xf32>
    %141 = vector.broadcast %138 : f32 to vector<16x16xf32>
    %142 = arith.mulf %140, %141 : vector<16x16xf32>
    %143 = arith.addf %131, %142 : vector<16x16xf32>
    %c1_133 = arith.constant 1 : index
    %144 = memref.load %arg3[%c1_133] : memref<99xf32, #tpu.memory_space<smem>>
    %c1_134 = arith.constant 1 : index
    %c0_135 = arith.constant 0 : index
    %c0_136 = arith.constant 0 : index
    %145 = vector.load %arg6[%c1_134, %c0_135, %c0_136] : memref<14x22x16xf32, #tpu.memory_space<vmem>>, vector<1x16x16xf32>
    %146 = vector.shape_cast %145 : vector<1x16x16xf32> to vector<16x16xf32>
    %147 = vector.broadcast %144 : f32 to vector<16x16xf32>
    %148 = arith.mulf %146, %147 : vector<16x16xf32>
    %149 = arith.addf %143, %148 : vector<16x16xf32>
    %c8_137 = arith.constant 8 : index
    %150 = memref.load %arg3[%c8_137] : memref<99xf32, #tpu.memory_space<smem>>
    %c1_138 = arith.constant 1 : index
    %c1_139 = arith.constant 1 : index
    %c0_140 = arith.constant 0 : index
    %151 = vector.load %arg6[%c1_138, %c1_139, %c0_140] : memref<14x22x16xf32, #tpu.memory_space<vmem>>, vector<1x16x16xf32>
    %152 = vector.shape_cast %151 : vector<1x16x16xf32> to vector<16x16xf32>
    %153 = vector.broadcast %150 : f32 to vector<16x16xf32>
    %154 = arith.mulf %152, %153 : vector<16x16xf32>
    %155 = arith.addf %137, %154 : vector<16x16xf32>
    %c15 = arith.constant 15 : index
    %156 = memref.load %arg3[%c15] : memref<99xf32, #tpu.memory_space<smem>>
    %c1_141 = arith.constant 1 : index
    %c2_142 = arith.constant 2 : index
    %c0_143 = arith.constant 0 : index
    %157 = vector.load %arg6[%c1_141, %c2_142, %c0_143] : memref<14x22x16xf32, #tpu.memory_space<vmem>>, vector<1x16x16xf32>
    %158 = vector.shape_cast %157 : vector<1x16x16xf32> to vector<16x16xf32>
    %159 = vector.broadcast %156 : f32 to vector<16x16xf32>
    %160 = arith.mulf %158, %159 : vector<16x16xf32>
    %161 = arith.addf %149, %160 : vector<16x16xf32>
    %c22 = arith.constant 22 : index
    %162 = memref.load %arg3[%c22] : memref<99xf32, #tpu.memory_space<smem>>
    %c1_144 = arith.constant 1 : index
    %c3_145 = arith.constant 3 : index
    %c0_146 = arith.constant 0 : index
    %163 = vector.load %arg6[%c1_144, %c3_145, %c0_146] : memref<14x22x16xf32, #tpu.memory_space<vmem>>, vector<1x16x16xf32>
    %164 = vector.shape_cast %163 : vector<1x16x16xf32> to vector<16x16xf32>
    %165 = vector.broadcast %162 : f32 to vector<16x16xf32>
    %166 = arith.mulf %164, %165 : vector<16x16xf32>
    %167 = arith.addf %155, %166 : vector<16x16xf32>
    %c29 = arith.constant 29 : index
    %168 = memref.load %arg3[%c29] : memref<99xf32, #tpu.memory_space<smem>>
    %c1_147 = arith.constant 1 : index
    %c4_148 = arith.constant 4 : index
    %c0_149 = arith.constant 0 : index
    %169 = vector.load %arg6[%c1_147, %c4_148, %c0_149] : memref<14x22x16xf32, #tpu.memory_space<vmem>>, vector<1x16x16xf32>
    %170 = vector.shape_cast %169 : vector<1x16x16xf32> to vector<16x16xf32>
    %171 = vector.broadcast %168 : f32 to vector<16x16xf32>
    %172 = arith.mulf %170, %171 : vector<16x16xf32>
    %173 = arith.addf %161, %172 : vector<16x16xf32>
    %c36 = arith.constant 36 : index
    %174 = memref.load %arg3[%c36] : memref<99xf32, #tpu.memory_space<smem>>
    %c1_150 = arith.constant 1 : index
    %c5_151 = arith.constant 5 : index
    %c0_152 = arith.constant 0 : index
    %175 = vector.load %arg6[%c1_150, %c5_151, %c0_152] : memref<14x22x16xf32, #tpu.memory_space<vmem>>, vector<1x16x16xf32>
    %176 = vector.shape_cast %175 : vector<1x16x16xf32> to vector<16x16xf32>
    %177 = vector.broadcast %174 : f32 to vector<16x16xf32>
    %178 = arith.mulf %176, %177 : vector<16x16xf32>
    %179 = arith.addf %167, %178 : vector<16x16xf32>
    %c43 = arith.constant 43 : index
    %180 = memref.load %arg3[%c43] : memref<99xf32, #tpu.memory_space<smem>>
    %c1_153 = arith.constant 1 : index
    %c6_154 = arith.constant 6 : index
    %c0_155 = arith.constant 0 : index
    %181 = vector.load %arg6[%c1_153, %c6_154, %c0_155] : memref<14x22x16xf32, #tpu.memory_space<vmem>>, vector<1x16x16xf32>
    %182 = vector.shape_cast %181 : vector<1x16x16xf32> to vector<16x16xf32>
    %183 = vector.broadcast %180 : f32 to vector<16x16xf32>
    %184 = arith.mulf %182, %183 : vector<16x16xf32>
    %185 = arith.addf %173, %184 : vector<16x16xf32>
    %c2_156 = arith.constant 2 : index
    %186 = memref.load %arg3[%c2_156] : memref<99xf32, #tpu.memory_space<smem>>
    %c2_157 = arith.constant 2 : index
    %c0_158 = arith.constant 0 : index
    %c0_159 = arith.constant 0 : index
    %187 = vector.load %arg6[%c2_157, %c0_158, %c0_159] : memref<14x22x16xf32, #tpu.memory_space<vmem>>, vector<1x16x16xf32>
    %188 = vector.shape_cast %187 : vector<1x16x16xf32> to vector<16x16xf32>
    %189 = vector.broadcast %186 : f32 to vector<16x16xf32>
    %190 = arith.mulf %188, %189 : vector<16x16xf32>
    %191 = arith.addf %185, %190 : vector<16x16xf32>
    %c9_160 = arith.constant 9 : index
    %192 = memref.load %arg3[%c9_160] : memref<99xf32, #tpu.memory_space<smem>>
    %c2_161 = arith.constant 2 : index
    %c1_162 = arith.constant 1 : index
    %c0_163 = arith.constant 0 : index
    %193 = vector.load %arg6[%c2_161, %c1_162, %c0_163] : memref<14x22x16xf32, #tpu.memory_space<vmem>>, vector<1x16x16xf32>
    %194 = vector.shape_cast %193 : vector<1x16x16xf32> to vector<16x16xf32>
    %195 = vector.broadcast %192 : f32 to vector<16x16xf32>
    %196 = arith.mulf %194, %195 : vector<16x16xf32>
    %197 = arith.addf %179, %196 : vector<16x16xf32>
    %c16 = arith.constant 16 : index
    %198 = memref.load %arg3[%c16] : memref<99xf32, #tpu.memory_space<smem>>
    %c2_164 = arith.constant 2 : index
    %c2_165 = arith.constant 2 : index
    %c0_166 = arith.constant 0 : index
    %199 = vector.load %arg6[%c2_164, %c2_165, %c0_166] : memref<14x22x16xf32, #tpu.memory_space<vmem>>, vector<1x16x16xf32>
    %200 = vector.shape_cast %199 : vector<1x16x16xf32> to vector<16x16xf32>
    %201 = vector.broadcast %198 : f32 to vector<16x16xf32>
    %202 = arith.mulf %200, %201 : vector<16x16xf32>
    %203 = arith.addf %191, %202 : vector<16x16xf32>
    %c23 = arith.constant 23 : index
    %204 = memref.load %arg3[%c23] : memref<99xf32, #tpu.memory_space<smem>>
    %c2_167 = arith.constant 2 : index
    %c3_168 = arith.constant 3 : index
    %c0_169 = arith.constant 0 : index
    %205 = vector.load %arg6[%c2_167, %c3_168, %c0_169] : memref<14x22x16xf32, #tpu.memory_space<vmem>>, vector<1x16x16xf32>
    %206 = vector.shape_cast %205 : vector<1x16x16xf32> to vector<16x16xf32>
    %207 = vector.broadcast %204 : f32 to vector<16x16xf32>
    %208 = arith.mulf %206, %207 : vector<16x16xf32>
    %209 = arith.addf %197, %208 : vector<16x16xf32>
    %c30 = arith.constant 30 : index
    %210 = memref.load %arg3[%c30] : memref<99xf32, #tpu.memory_space<smem>>
    %c2_170 = arith.constant 2 : index
    %c4_171 = arith.constant 4 : index
    %c0_172 = arith.constant 0 : index
    %211 = vector.load %arg6[%c2_170, %c4_171, %c0_172] : memref<14x22x16xf32, #tpu.memory_space<vmem>>, vector<1x16x16xf32>
    %212 = vector.shape_cast %211 : vector<1x16x16xf32> to vector<16x16xf32>
    %213 = vector.broadcast %210 : f32 to vector<16x16xf32>
    %214 = arith.mulf %212, %213 : vector<16x16xf32>
    %215 = arith.addf %203, %214 : vector<16x16xf32>
    %c37 = arith.constant 37 : index
    %216 = memref.load %arg3[%c37] : memref<99xf32, #tpu.memory_space<smem>>
    %c2_173 = arith.constant 2 : index
    %c5_174 = arith.constant 5 : index
    %c0_175 = arith.constant 0 : index
    %217 = vector.load %arg6[%c2_173, %c5_174, %c0_175] : memref<14x22x16xf32, #tpu.memory_space<vmem>>, vector<1x16x16xf32>
    %218 = vector.shape_cast %217 : vector<1x16x16xf32> to vector<16x16xf32>
    %219 = vector.broadcast %216 : f32 to vector<16x16xf32>
    %220 = arith.mulf %218, %219 : vector<16x16xf32>
    %221 = arith.addf %209, %220 : vector<16x16xf32>
    %c44 = arith.constant 44 : index
    %222 = memref.load %arg3[%c44] : memref<99xf32, #tpu.memory_space<smem>>
    %c2_176 = arith.constant 2 : index
    %c6_177 = arith.constant 6 : index
    %c0_178 = arith.constant 0 : index
    %223 = vector.load %arg6[%c2_176, %c6_177, %c0_178] : memref<14x22x16xf32, #tpu.memory_space<vmem>>, vector<1x16x16xf32>
    %224 = vector.shape_cast %223 : vector<1x16x16xf32> to vector<16x16xf32>
    %225 = vector.broadcast %222 : f32 to vector<16x16xf32>
    %226 = arith.mulf %224, %225 : vector<16x16xf32>
    %227 = arith.addf %215, %226 : vector<16x16xf32>
    %c3_179 = arith.constant 3 : index
    %228 = memref.load %arg3[%c3_179] : memref<99xf32, #tpu.memory_space<smem>>
    %c3_180 = arith.constant 3 : index
    %c0_181 = arith.constant 0 : index
    %c0_182 = arith.constant 0 : index
    %229 = vector.load %arg6[%c3_180, %c0_181, %c0_182] : memref<14x22x16xf32, #tpu.memory_space<vmem>>, vector<1x16x16xf32>
    %230 = vector.shape_cast %229 : vector<1x16x16xf32> to vector<16x16xf32>
    %231 = vector.broadcast %228 : f32 to vector<16x16xf32>
    %232 = arith.mulf %230, %231 : vector<16x16xf32>
    %233 = arith.addf %227, %232 : vector<16x16xf32>
    %c10_183 = arith.constant 10 : index
    %234 = memref.load %arg3[%c10_183] : memref<99xf32, #tpu.memory_space<smem>>
    %c3_184 = arith.constant 3 : index
    %c1_185 = arith.constant 1 : index
    %c0_186 = arith.constant 0 : index
    %235 = vector.load %arg6[%c3_184, %c1_185, %c0_186] : memref<14x22x16xf32, #tpu.memory_space<vmem>>, vector<1x16x16xf32>
    %236 = vector.shape_cast %235 : vector<1x16x16xf32> to vector<16x16xf32>
    %237 = vector.broadcast %234 : f32 to vector<16x16xf32>
    %238 = arith.mulf %236, %237 : vector<16x16xf32>
    %239 = arith.addf %221, %238 : vector<16x16xf32>
    %c17 = arith.constant 17 : index
    %240 = memref.load %arg3[%c17] : memref<99xf32, #tpu.memory_space<smem>>
    %c3_187 = arith.constant 3 : index
    %c2_188 = arith.constant 2 : index
    %c0_189 = arith.constant 0 : index
    %241 = vector.load %arg6[%c3_187, %c2_188, %c0_189] : memref<14x22x16xf32, #tpu.memory_space<vmem>>, vector<1x16x16xf32>
    %242 = vector.shape_cast %241 : vector<1x16x16xf32> to vector<16x16xf32>
    %243 = vector.broadcast %240 : f32 to vector<16x16xf32>
    %244 = arith.mulf %242, %243 : vector<16x16xf32>
    %245 = arith.addf %233, %244 : vector<16x16xf32>
    %c24 = arith.constant 24 : index
    %246 = memref.load %arg3[%c24] : memref<99xf32, #tpu.memory_space<smem>>
    %c3_190 = arith.constant 3 : index
    %c3_191 = arith.constant 3 : index
    %c0_192 = arith.constant 0 : index
    %247 = vector.load %arg6[%c3_190, %c3_191, %c0_192] : memref<14x22x16xf32, #tpu.memory_space<vmem>>, vector<1x16x16xf32>
    %248 = vector.shape_cast %247 : vector<1x16x16xf32> to vector<16x16xf32>
    %249 = vector.broadcast %246 : f32 to vector<16x16xf32>
    %250 = arith.mulf %248, %249 : vector<16x16xf32>
    %251 = arith.addf %239, %250 : vector<16x16xf32>
    %c31 = arith.constant 31 : index
    %252 = memref.load %arg3[%c31] : memref<99xf32, #tpu.memory_space<smem>>
    %c3_193 = arith.constant 3 : index
    %c4_194 = arith.constant 4 : index
    %c0_195 = arith.constant 0 : index
    %253 = vector.load %arg6[%c3_193, %c4_194, %c0_195] : memref<14x22x16xf32, #tpu.memory_space<vmem>>, vector<1x16x16xf32>
    %254 = vector.shape_cast %253 : vector<1x16x16xf32> to vector<16x16xf32>
    %255 = vector.broadcast %252 : f32 to vector<16x16xf32>
    %256 = arith.mulf %254, %255 : vector<16x16xf32>
    %257 = arith.addf %245, %256 : vector<16x16xf32>
    %c38 = arith.constant 38 : index
    %258 = memref.load %arg3[%c38] : memref<99xf32, #tpu.memory_space<smem>>
    %c3_196 = arith.constant 3 : index
    %c5_197 = arith.constant 5 : index
    %c0_198 = arith.constant 0 : index
    %259 = vector.load %arg6[%c3_196, %c5_197, %c0_198] : memref<14x22x16xf32, #tpu.memory_space<vmem>>, vector<1x16x16xf32>
    %260 = vector.shape_cast %259 : vector<1x16x16xf32> to vector<16x16xf32>
    %261 = vector.broadcast %258 : f32 to vector<16x16xf32>
    %262 = arith.mulf %260, %261 : vector<16x16xf32>
    %263 = arith.addf %251, %262 : vector<16x16xf32>
    %c45 = arith.constant 45 : index
    %264 = memref.load %arg3[%c45] : memref<99xf32, #tpu.memory_space<smem>>
    %c3_199 = arith.constant 3 : index
    %c6_200 = arith.constant 6 : index
    %c0_201 = arith.constant 0 : index
    %265 = vector.load %arg6[%c3_199, %c6_200, %c0_201] : memref<14x22x16xf32, #tpu.memory_space<vmem>>, vector<1x16x16xf32>
    %266 = vector.shape_cast %265 : vector<1x16x16xf32> to vector<16x16xf32>
    %267 = vector.broadcast %264 : f32 to vector<16x16xf32>
    %268 = arith.mulf %266, %267 : vector<16x16xf32>
    %269 = arith.addf %257, %268 : vector<16x16xf32>
    %c4_202 = arith.constant 4 : index
    %270 = memref.load %arg3[%c4_202] : memref<99xf32, #tpu.memory_space<smem>>
    %c4_203 = arith.constant 4 : index
    %c0_204 = arith.constant 0 : index
    %c0_205 = arith.constant 0 : index
    %271 = vector.load %arg6[%c4_203, %c0_204, %c0_205] : memref<14x22x16xf32, #tpu.memory_space<vmem>>, vector<1x16x16xf32>
    %272 = vector.shape_cast %271 : vector<1x16x16xf32> to vector<16x16xf32>
    %273 = vector.broadcast %270 : f32 to vector<16x16xf32>
    %274 = arith.mulf %272, %273 : vector<16x16xf32>
    %275 = arith.addf %269, %274 : vector<16x16xf32>
    %c11_206 = arith.constant 11 : index
    %276 = memref.load %arg3[%c11_206] : memref<99xf32, #tpu.memory_space<smem>>
    %c4_207 = arith.constant 4 : index
    %c1_208 = arith.constant 1 : index
    %c0_209 = arith.constant 0 : index
    %277 = vector.load %arg6[%c4_207, %c1_208, %c0_209] : memref<14x22x16xf32, #tpu.memory_space<vmem>>, vector<1x16x16xf32>
    %278 = vector.shape_cast %277 : vector<1x16x16xf32> to vector<16x16xf32>
    %279 = vector.broadcast %276 : f32 to vector<16x16xf32>
    %280 = arith.mulf %278, %279 : vector<16x16xf32>
    %281 = arith.addf %263, %280 : vector<16x16xf32>
    %c18 = arith.constant 18 : index
    %282 = memref.load %arg3[%c18] : memref<99xf32, #tpu.memory_space<smem>>
    %c4_210 = arith.constant 4 : index
    %c2_211 = arith.constant 2 : index
    %c0_212 = arith.constant 0 : index
    %283 = vector.load %arg6[%c4_210, %c2_211, %c0_212] : memref<14x22x16xf32, #tpu.memory_space<vmem>>, vector<1x16x16xf32>
    %284 = vector.shape_cast %283 : vector<1x16x16xf32> to vector<16x16xf32>
    %285 = vector.broadcast %282 : f32 to vector<16x16xf32>
    %286 = arith.mulf %284, %285 : vector<16x16xf32>
    %287 = arith.addf %275, %286 : vector<16x16xf32>
    %c25 = arith.constant 25 : index
    %288 = memref.load %arg3[%c25] : memref<99xf32, #tpu.memory_space<smem>>
    %c4_213 = arith.constant 4 : index
    %c3_214 = arith.constant 3 : index
    %c0_215 = arith.constant 0 : index
    %289 = vector.load %arg6[%c4_213, %c3_214, %c0_215] : memref<14x22x16xf32, #tpu.memory_space<vmem>>, vector<1x16x16xf32>
    %290 = vector.shape_cast %289 : vector<1x16x16xf32> to vector<16x16xf32>
    %291 = vector.broadcast %288 : f32 to vector<16x16xf32>
    %292 = arith.mulf %290, %291 : vector<16x16xf32>
    %293 = arith.addf %281, %292 : vector<16x16xf32>
    %c32 = arith.constant 32 : index
    %294 = memref.load %arg3[%c32] : memref<99xf32, #tpu.memory_space<smem>>
    %c4_216 = arith.constant 4 : index
    %c4_217 = arith.constant 4 : index
    %c0_218 = arith.constant 0 : index
    %295 = vector.load %arg6[%c4_216, %c4_217, %c0_218] : memref<14x22x16xf32, #tpu.memory_space<vmem>>, vector<1x16x16xf32>
    %296 = vector.shape_cast %295 : vector<1x16x16xf32> to vector<16x16xf32>
    %297 = vector.broadcast %294 : f32 to vector<16x16xf32>
    %298 = arith.mulf %296, %297 : vector<16x16xf32>
    %299 = arith.addf %287, %298 : vector<16x16xf32>
    %c39 = arith.constant 39 : index
    %300 = memref.load %arg3[%c39] : memref<99xf32, #tpu.memory_space<smem>>
    %c4_219 = arith.constant 4 : index
    %c5_220 = arith.constant 5 : index
    %c0_221 = arith.constant 0 : index
    %301 = vector.load %arg6[%c4_219, %c5_220, %c0_221] : memref<14x22x16xf32, #tpu.memory_space<vmem>>, vector<1x16x16xf32>
    %302 = vector.shape_cast %301 : vector<1x16x16xf32> to vector<16x16xf32>
    %303 = vector.broadcast %300 : f32 to vector<16x16xf32>
    %304 = arith.mulf %302, %303 : vector<16x16xf32>
    %305 = arith.addf %293, %304 : vector<16x16xf32>
    %c46 = arith.constant 46 : index
    %306 = memref.load %arg3[%c46] : memref<99xf32, #tpu.memory_space<smem>>
    %c4_222 = arith.constant 4 : index
    %c6_223 = arith.constant 6 : index
    %c0_224 = arith.constant 0 : index
    %307 = vector.load %arg6[%c4_222, %c6_223, %c0_224] : memref<14x22x16xf32, #tpu.memory_space<vmem>>, vector<1x16x16xf32>
    %308 = vector.shape_cast %307 : vector<1x16x16xf32> to vector<16x16xf32>
    %309 = vector.broadcast %306 : f32 to vector<16x16xf32>
    %310 = arith.mulf %308, %309 : vector<16x16xf32>
    %311 = arith.addf %299, %310 : vector<16x16xf32>
    %c5_225 = arith.constant 5 : index
    %312 = memref.load %arg3[%c5_225] : memref<99xf32, #tpu.memory_space<smem>>
    %c5_226 = arith.constant 5 : index
    %c0_227 = arith.constant 0 : index
    %c0_228 = arith.constant 0 : index
    %313 = vector.load %arg6[%c5_226, %c0_227, %c0_228] : memref<14x22x16xf32, #tpu.memory_space<vmem>>, vector<1x16x16xf32>
    %314 = vector.shape_cast %313 : vector<1x16x16xf32> to vector<16x16xf32>
    %315 = vector.broadcast %312 : f32 to vector<16x16xf32>
    %316 = arith.mulf %314, %315 : vector<16x16xf32>
    %317 = arith.addf %311, %316 : vector<16x16xf32>
    %c12_229 = arith.constant 12 : index
    %318 = memref.load %arg3[%c12_229] : memref<99xf32, #tpu.memory_space<smem>>
    %c5_230 = arith.constant 5 : index
    %c1_231 = arith.constant 1 : index
    %c0_232 = arith.constant 0 : index
    %319 = vector.load %arg6[%c5_230, %c1_231, %c0_232] : memref<14x22x16xf32, #tpu.memory_space<vmem>>, vector<1x16x16xf32>
    %320 = vector.shape_cast %319 : vector<1x16x16xf32> to vector<16x16xf32>
    %321 = vector.broadcast %318 : f32 to vector<16x16xf32>
    %322 = arith.mulf %320, %321 : vector<16x16xf32>
    %323 = arith.addf %305, %322 : vector<16x16xf32>
    %c19_233 = arith.constant 19 : index
    %324 = memref.load %arg3[%c19_233] : memref<99xf32, #tpu.memory_space<smem>>
    %c5_234 = arith.constant 5 : index
    %c2_235 = arith.constant 2 : index
    %c0_236 = arith.constant 0 : index
    %325 = vector.load %arg6[%c5_234, %c2_235, %c0_236] : memref<14x22x16xf32, #tpu.memory_space<vmem>>, vector<1x16x16xf32>
    %326 = vector.shape_cast %325 : vector<1x16x16xf32> to vector<16x16xf32>
    %327 = vector.broadcast %324 : f32 to vector<16x16xf32>
    %328 = arith.mulf %326, %327 : vector<16x16xf32>
    %329 = arith.addf %317, %328 : vector<16x16xf32>
    %c26 = arith.constant 26 : index
    %330 = memref.load %arg3[%c26] : memref<99xf32, #tpu.memory_space<smem>>
    %c5_237 = arith.constant 5 : index
    %c3_238 = arith.constant 3 : index
    %c0_239 = arith.constant 0 : index
    %331 = vector.load %arg6[%c5_237, %c3_238, %c0_239] : memref<14x22x16xf32, #tpu.memory_space<vmem>>, vector<1x16x16xf32>
    %332 = vector.shape_cast %331 : vector<1x16x16xf32> to vector<16x16xf32>
    %333 = vector.broadcast %330 : f32 to vector<16x16xf32>
    %334 = arith.mulf %332, %333 : vector<16x16xf32>
    %335 = arith.addf %323, %334 : vector<16x16xf32>
    %c33 = arith.constant 33 : index
    %336 = memref.load %arg3[%c33] : memref<99xf32, #tpu.memory_space<smem>>
    %c5_240 = arith.constant 5 : index
    %c4_241 = arith.constant 4 : index
    %c0_242 = arith.constant 0 : index
    %337 = vector.load %arg6[%c5_240, %c4_241, %c0_242] : memref<14x22x16xf32, #tpu.memory_space<vmem>>, vector<1x16x16xf32>
    %338 = vector.shape_cast %337 : vector<1x16x16xf32> to vector<16x16xf32>
    %339 = vector.broadcast %336 : f32 to vector<16x16xf32>
    %340 = arith.mulf %338, %339 : vector<16x16xf32>
    %341 = arith.addf %329, %340 : vector<16x16xf32>
    %c40 = arith.constant 40 : index
    %342 = memref.load %arg3[%c40] : memref<99xf32, #tpu.memory_space<smem>>
    %c5_243 = arith.constant 5 : index
    %c5_244 = arith.constant 5 : index
    %c0_245 = arith.constant 0 : index
    %343 = vector.load %arg6[%c5_243, %c5_244, %c0_245] : memref<14x22x16xf32, #tpu.memory_space<vmem>>, vector<1x16x16xf32>
    %344 = vector.shape_cast %343 : vector<1x16x16xf32> to vector<16x16xf32>
    %345 = vector.broadcast %342 : f32 to vector<16x16xf32>
    %346 = arith.mulf %344, %345 : vector<16x16xf32>
    %347 = arith.addf %335, %346 : vector<16x16xf32>
    %c47 = arith.constant 47 : index
    %348 = memref.load %arg3[%c47] : memref<99xf32, #tpu.memory_space<smem>>
    %c5_246 = arith.constant 5 : index
    %c6_247 = arith.constant 6 : index
    %c0_248 = arith.constant 0 : index
    %349 = vector.load %arg6[%c5_246, %c6_247, %c0_248] : memref<14x22x16xf32, #tpu.memory_space<vmem>>, vector<1x16x16xf32>
    %350 = vector.shape_cast %349 : vector<1x16x16xf32> to vector<16x16xf32>
    %351 = vector.broadcast %348 : f32 to vector<16x16xf32>
    %352 = arith.mulf %350, %351 : vector<16x16xf32>
    %353 = arith.addf %341, %352 : vector<16x16xf32>
    %c6_249 = arith.constant 6 : index
    %354 = memref.load %arg3[%c6_249] : memref<99xf32, #tpu.memory_space<smem>>
    %c6_250 = arith.constant 6 : index
    %c0_251 = arith.constant 0 : index
    %c0_252 = arith.constant 0 : index
    %355 = vector.load %arg6[%c6_250, %c0_251, %c0_252] : memref<14x22x16xf32, #tpu.memory_space<vmem>>, vector<1x16x16xf32>
    %356 = vector.shape_cast %355 : vector<1x16x16xf32> to vector<16x16xf32>
    %357 = vector.broadcast %354 : f32 to vector<16x16xf32>
    %358 = arith.mulf %356, %357 : vector<16x16xf32>
    %359 = arith.addf %353, %358 : vector<16x16xf32>
    %c13_253 = arith.constant 13 : index
    %360 = memref.load %arg3[%c13_253] : memref<99xf32, #tpu.memory_space<smem>>
    %c6_254 = arith.constant 6 : index
    %c1_255 = arith.constant 1 : index
    %c0_256 = arith.constant 0 : index
    %361 = vector.load %arg6[%c6_254, %c1_255, %c0_256] : memref<14x22x16xf32, #tpu.memory_space<vmem>>, vector<1x16x16xf32>
    %362 = vector.shape_cast %361 : vector<1x16x16xf32> to vector<16x16xf32>
    %363 = vector.broadcast %360 : f32 to vector<16x16xf32>
    %364 = arith.mulf %362, %363 : vector<16x16xf32>
    %365 = arith.addf %347, %364 : vector<16x16xf32>
    %c20 = arith.constant 20 : index
    %366 = memref.load %arg3[%c20] : memref<99xf32, #tpu.memory_space<smem>>
    %c6_257 = arith.constant 6 : index
    %c2_258 = arith.constant 2 : index
    %c0_259 = arith.constant 0 : index
    %367 = vector.load %arg6[%c6_257, %c2_258, %c0_259] : memref<14x22x16xf32, #tpu.memory_space<vmem>>, vector<1x16x16xf32>
    %368 = vector.shape_cast %367 : vector<1x16x16xf32> to vector<16x16xf32>
    %369 = vector.broadcast %366 : f32 to vector<16x16xf32>
    %370 = arith.mulf %368, %369 : vector<16x16xf32>
    %371 = arith.addf %359, %370 : vector<16x16xf32>
    %c27 = arith.constant 27 : index
    %372 = memref.load %arg3[%c27] : memref<99xf32, #tpu.memory_space<smem>>
    %c6_260 = arith.constant 6 : index
    %c3_261 = arith.constant 3 : index
    %c0_262 = arith.constant 0 : index
    %373 = vector.load %arg6[%c6_260, %c3_261, %c0_262] : memref<14x22x16xf32, #tpu.memory_space<vmem>>, vector<1x16x16xf32>
    %374 = vector.shape_cast %373 : vector<1x16x16xf32> to vector<16x16xf32>
    %375 = vector.broadcast %372 : f32 to vector<16x16xf32>
    %376 = arith.mulf %374, %375 : vector<16x16xf32>
    %377 = arith.addf %365, %376 : vector<16x16xf32>
    %c34 = arith.constant 34 : index
    %378 = memref.load %arg3[%c34] : memref<99xf32, #tpu.memory_space<smem>>
    %c6_263 = arith.constant 6 : index
    %c4_264 = arith.constant 4 : index
    %c0_265 = arith.constant 0 : index
    %379 = vector.load %arg6[%c6_263, %c4_264, %c0_265] : memref<14x22x16xf32, #tpu.memory_space<vmem>>, vector<1x16x16xf32>
    %380 = vector.shape_cast %379 : vector<1x16x16xf32> to vector<16x16xf32>
    %381 = vector.broadcast %378 : f32 to vector<16x16xf32>
    %382 = arith.mulf %380, %381 : vector<16x16xf32>
    %383 = arith.addf %371, %382 : vector<16x16xf32>
    %c41 = arith.constant 41 : index
    %384 = memref.load %arg3[%c41] : memref<99xf32, #tpu.memory_space<smem>>
    %c6_266 = arith.constant 6 : index
    %c5_267 = arith.constant 5 : index
    %c0_268 = arith.constant 0 : index
    %385 = vector.load %arg6[%c6_266, %c5_267, %c0_268] : memref<14x22x16xf32, #tpu.memory_space<vmem>>, vector<1x16x16xf32>
    %386 = vector.shape_cast %385 : vector<1x16x16xf32> to vector<16x16xf32>
    %387 = vector.broadcast %384 : f32 to vector<16x16xf32>
    %388 = arith.mulf %386, %387 : vector<16x16xf32>
    %389 = arith.addf %377, %388 : vector<16x16xf32>
    %c48 = arith.constant 48 : index
    %390 = memref.load %arg3[%c48] : memref<99xf32, #tpu.memory_space<smem>>
    %c6_269 = arith.constant 6 : index
    %c6_270 = arith.constant 6 : index
    %c0_271 = arith.constant 0 : index
    %391 = vector.load %arg6[%c6_269, %c6_270, %c0_271] : memref<14x22x16xf32, #tpu.memory_space<vmem>>, vector<1x16x16xf32>
    %392 = vector.shape_cast %391 : vector<1x16x16xf32> to vector<16x16xf32>
    %393 = vector.broadcast %390 : f32 to vector<16x16xf32>
    %394 = arith.mulf %392, %393 : vector<16x16xf32>
    %395 = arith.addf %383, %394 : vector<16x16xf32>
    %c49 = arith.constant 49 : index
    %396 = memref.load %arg3[%c49] : memref<99xf32, #tpu.memory_space<smem>>
    %c7_272 = arith.constant 7 : index
    %c0_273 = arith.constant 0 : index
    %c0_274 = arith.constant 0 : index
    %397 = vector.load %arg6[%c7_272, %c0_273, %c0_274] : memref<14x22x16xf32, #tpu.memory_space<vmem>>, vector<1x16x16xf32>
    %398 = vector.shape_cast %397 : vector<1x16x16xf32> to vector<16x16xf32>
    %399 = vector.broadcast %396 : f32 to vector<16x16xf32>
    %400 = arith.mulf %398, %399 : vector<16x16xf32>
    %401 = arith.addf %100, %400 : vector<16x16xf32>
    %c56 = arith.constant 56 : index
    %402 = memref.load %arg3[%c56] : memref<99xf32, #tpu.memory_space<smem>>
    %c7_275 = arith.constant 7 : index
    %c1_276 = arith.constant 1 : index
    %c0_277 = arith.constant 0 : index
    %403 = vector.load %arg6[%c7_275, %c1_276, %c0_277] : memref<14x22x16xf32, #tpu.memory_space<vmem>>, vector<1x16x16xf32>
    %404 = vector.shape_cast %403 : vector<1x16x16xf32> to vector<16x16xf32>
    %405 = vector.broadcast %402 : f32 to vector<16x16xf32>
    %406 = arith.mulf %404, %405 : vector<16x16xf32>
    %407 = arith.addf %101, %406 : vector<16x16xf32>
    %c63 = arith.constant 63 : index
    %408 = memref.load %arg3[%c63] : memref<99xf32, #tpu.memory_space<smem>>
    %c7_278 = arith.constant 7 : index
    %c2_279 = arith.constant 2 : index
    %c0_280 = arith.constant 0 : index
    %409 = vector.load %arg6[%c7_278, %c2_279, %c0_280] : memref<14x22x16xf32, #tpu.memory_space<vmem>>, vector<1x16x16xf32>
    %410 = vector.shape_cast %409 : vector<1x16x16xf32> to vector<16x16xf32>
    %411 = vector.broadcast %408 : f32 to vector<16x16xf32>
    %412 = arith.mulf %410, %411 : vector<16x16xf32>
    %413 = arith.addf %401, %412 : vector<16x16xf32>
    %c70 = arith.constant 70 : index
    %414 = memref.load %arg3[%c70] : memref<99xf32, #tpu.memory_space<smem>>
    %c7_281 = arith.constant 7 : index
    %c3_282 = arith.constant 3 : index
    %c0_283 = arith.constant 0 : index
    %415 = vector.load %arg6[%c7_281, %c3_282, %c0_283] : memref<14x22x16xf32, #tpu.memory_space<vmem>>, vector<1x16x16xf32>
    %416 = vector.shape_cast %415 : vector<1x16x16xf32> to vector<16x16xf32>
    %417 = vector.broadcast %414 : f32 to vector<16x16xf32>
    %418 = arith.mulf %416, %417 : vector<16x16xf32>
    %419 = arith.addf %407, %418 : vector<16x16xf32>
    %c77 = arith.constant 77 : index
    %420 = memref.load %arg3[%c77] : memref<99xf32, #tpu.memory_space<smem>>
    %c7_284 = arith.constant 7 : index
    %c4_285 = arith.constant 4 : index
    %c0_286 = arith.constant 0 : index
    %421 = vector.load %arg6[%c7_284, %c4_285, %c0_286] : memref<14x22x16xf32, #tpu.memory_space<vmem>>, vector<1x16x16xf32>
    %422 = vector.shape_cast %421 : vector<1x16x16xf32> to vector<16x16xf32>
    %423 = vector.broadcast %420 : f32 to vector<16x16xf32>
    %424 = arith.mulf %422, %423 : vector<16x16xf32>
    %425 = arith.addf %413, %424 : vector<16x16xf32>
    %c84 = arith.constant 84 : index
    %426 = memref.load %arg3[%c84] : memref<99xf32, #tpu.memory_space<smem>>
    %c7_287 = arith.constant 7 : index
    %c5_288 = arith.constant 5 : index
    %c0_289 = arith.constant 0 : index
    %427 = vector.load %arg6[%c7_287, %c5_288, %c0_289] : memref<14x22x16xf32, #tpu.memory_space<vmem>>, vector<1x16x16xf32>
    %428 = vector.shape_cast %427 : vector<1x16x16xf32> to vector<16x16xf32>
    %429 = vector.broadcast %426 : f32 to vector<16x16xf32>
    %430 = arith.mulf %428, %429 : vector<16x16xf32>
    %431 = arith.addf %419, %430 : vector<16x16xf32>
    %c91 = arith.constant 91 : index
    %432 = memref.load %arg3[%c91] : memref<99xf32, #tpu.memory_space<smem>>
    %c7_290 = arith.constant 7 : index
    %c6_291 = arith.constant 6 : index
    %c0_292 = arith.constant 0 : index
    %433 = vector.load %arg6[%c7_290, %c6_291, %c0_292] : memref<14x22x16xf32, #tpu.memory_space<vmem>>, vector<1x16x16xf32>
    %434 = vector.shape_cast %433 : vector<1x16x16xf32> to vector<16x16xf32>
    %435 = vector.broadcast %432 : f32 to vector<16x16xf32>
    %436 = arith.mulf %434, %435 : vector<16x16xf32>
    %437 = arith.addf %425, %436 : vector<16x16xf32>
    %c50 = arith.constant 50 : index
    %438 = memref.load %arg3[%c50] : memref<99xf32, #tpu.memory_space<smem>>
    %c8_293 = arith.constant 8 : index
    %c0_294 = arith.constant 0 : index
    %c0_295 = arith.constant 0 : index
    %439 = vector.load %arg6[%c8_293, %c0_294, %c0_295] : memref<14x22x16xf32, #tpu.memory_space<vmem>>, vector<1x16x16xf32>
    %440 = vector.shape_cast %439 : vector<1x16x16xf32> to vector<16x16xf32>
    %441 = vector.broadcast %438 : f32 to vector<16x16xf32>
    %442 = arith.mulf %440, %441 : vector<16x16xf32>
    %443 = arith.addf %437, %442 : vector<16x16xf32>
    %c57 = arith.constant 57 : index
    %444 = memref.load %arg3[%c57] : memref<99xf32, #tpu.memory_space<smem>>
    %c8_296 = arith.constant 8 : index
    %c1_297 = arith.constant 1 : index
    %c0_298 = arith.constant 0 : index
    %445 = vector.load %arg6[%c8_296, %c1_297, %c0_298] : memref<14x22x16xf32, #tpu.memory_space<vmem>>, vector<1x16x16xf32>
    %446 = vector.shape_cast %445 : vector<1x16x16xf32> to vector<16x16xf32>
    %447 = vector.broadcast %444 : f32 to vector<16x16xf32>
    %448 = arith.mulf %446, %447 : vector<16x16xf32>
    %449 = arith.addf %431, %448 : vector<16x16xf32>
    %c64 = arith.constant 64 : index
    %450 = memref.load %arg3[%c64] : memref<99xf32, #tpu.memory_space<smem>>
    %c8_299 = arith.constant 8 : index
    %c2_300 = arith.constant 2 : index
    %c0_301 = arith.constant 0 : index
    %451 = vector.load %arg6[%c8_299, %c2_300, %c0_301] : memref<14x22x16xf32, #tpu.memory_space<vmem>>, vector<1x16x16xf32>
    %452 = vector.shape_cast %451 : vector<1x16x16xf32> to vector<16x16xf32>
    %453 = vector.broadcast %450 : f32 to vector<16x16xf32>
    %454 = arith.mulf %452, %453 : vector<16x16xf32>
    %455 = arith.addf %443, %454 : vector<16x16xf32>
    %c71 = arith.constant 71 : index
    %456 = memref.load %arg3[%c71] : memref<99xf32, #tpu.memory_space<smem>>
    %c8_302 = arith.constant 8 : index
    %c3_303 = arith.constant 3 : index
    %c0_304 = arith.constant 0 : index
    %457 = vector.load %arg6[%c8_302, %c3_303, %c0_304] : memref<14x22x16xf32, #tpu.memory_space<vmem>>, vector<1x16x16xf32>
    %458 = vector.shape_cast %457 : vector<1x16x16xf32> to vector<16x16xf32>
    %459 = vector.broadcast %456 : f32 to vector<16x16xf32>
    %460 = arith.mulf %458, %459 : vector<16x16xf32>
    %461 = arith.addf %449, %460 : vector<16x16xf32>
    %c78 = arith.constant 78 : index
    %462 = memref.load %arg3[%c78] : memref<99xf32, #tpu.memory_space<smem>>
    %c8_305 = arith.constant 8 : index
    %c4_306 = arith.constant 4 : index
    %c0_307 = arith.constant 0 : index
    %463 = vector.load %arg6[%c8_305, %c4_306, %c0_307] : memref<14x22x16xf32, #tpu.memory_space<vmem>>, vector<1x16x16xf32>
    %464 = vector.shape_cast %463 : vector<1x16x16xf32> to vector<16x16xf32>
    %465 = vector.broadcast %462 : f32 to vector<16x16xf32>
    %466 = arith.mulf %464, %465 : vector<16x16xf32>
    %467 = arith.addf %455, %466 : vector<16x16xf32>
    %c85 = arith.constant 85 : index
    %468 = memref.load %arg3[%c85] : memref<99xf32, #tpu.memory_space<smem>>
    %c8_308 = arith.constant 8 : index
    %c5_309 = arith.constant 5 : index
    %c0_310 = arith.constant 0 : index
    %469 = vector.load %arg6[%c8_308, %c5_309, %c0_310] : memref<14x22x16xf32, #tpu.memory_space<vmem>>, vector<1x16x16xf32>
    %470 = vector.shape_cast %469 : vector<1x16x16xf32> to vector<16x16xf32>
    %471 = vector.broadcast %468 : f32 to vector<16x16xf32>
    %472 = arith.mulf %470, %471 : vector<16x16xf32>
    %473 = arith.addf %461, %472 : vector<16x16xf32>
    %c92 = arith.constant 92 : index
    %474 = memref.load %arg3[%c92] : memref<99xf32, #tpu.memory_space<smem>>
    %c8_311 = arith.constant 8 : index
    %c6_312 = arith.constant 6 : index
    %c0_313 = arith.constant 0 : index
    %475 = vector.load %arg6[%c8_311, %c6_312, %c0_313] : memref<14x22x16xf32, #tpu.memory_space<vmem>>, vector<1x16x16xf32>
    %476 = vector.shape_cast %475 : vector<1x16x16xf32> to vector<16x16xf32>
    %477 = vector.broadcast %474 : f32 to vector<16x16xf32>
    %478 = arith.mulf %476, %477 : vector<16x16xf32>
    %479 = arith.addf %467, %478 : vector<16x16xf32>
    %c51 = arith.constant 51 : index
    %480 = memref.load %arg3[%c51] : memref<99xf32, #tpu.memory_space<smem>>
    %c9_314 = arith.constant 9 : index
    %c0_315 = arith.constant 0 : index
    %c0_316 = arith.constant 0 : index
    %481 = vector.load %arg6[%c9_314, %c0_315, %c0_316] : memref<14x22x16xf32, #tpu.memory_space<vmem>>, vector<1x16x16xf32>
    %482 = vector.shape_cast %481 : vector<1x16x16xf32> to vector<16x16xf32>
    %483 = vector.broadcast %480 : f32 to vector<16x16xf32>
    %484 = arith.mulf %482, %483 : vector<16x16xf32>
    %485 = arith.addf %479, %484 : vector<16x16xf32>
    %c58 = arith.constant 58 : index
    %486 = memref.load %arg3[%c58] : memref<99xf32, #tpu.memory_space<smem>>
    %c9_317 = arith.constant 9 : index
    %c1_318 = arith.constant 1 : index
    %c0_319 = arith.constant 0 : index
    %487 = vector.load %arg6[%c9_317, %c1_318, %c0_319] : memref<14x22x16xf32, #tpu.memory_space<vmem>>, vector<1x16x16xf32>
    %488 = vector.shape_cast %487 : vector<1x16x16xf32> to vector<16x16xf32>
    %489 = vector.broadcast %486 : f32 to vector<16x16xf32>
    %490 = arith.mulf %488, %489 : vector<16x16xf32>
    %491 = arith.addf %473, %490 : vector<16x16xf32>
    %c65 = arith.constant 65 : index
    %492 = memref.load %arg3[%c65] : memref<99xf32, #tpu.memory_space<smem>>
    %c9_320 = arith.constant 9 : index
    %c2_321 = arith.constant 2 : index
    %c0_322 = arith.constant 0 : index
    %493 = vector.load %arg6[%c9_320, %c2_321, %c0_322] : memref<14x22x16xf32, #tpu.memory_space<vmem>>, vector<1x16x16xf32>
    %494 = vector.shape_cast %493 : vector<1x16x16xf32> to vector<16x16xf32>
    %495 = vector.broadcast %492 : f32 to vector<16x16xf32>
    %496 = arith.mulf %494, %495 : vector<16x16xf32>
    %497 = arith.addf %485, %496 : vector<16x16xf32>
    %c72 = arith.constant 72 : index
    %498 = memref.load %arg3[%c72] : memref<99xf32, #tpu.memory_space<smem>>
    %c9_323 = arith.constant 9 : index
    %c3_324 = arith.constant 3 : index
    %c0_325 = arith.constant 0 : index
    %499 = vector.load %arg6[%c9_323, %c3_324, %c0_325] : memref<14x22x16xf32, #tpu.memory_space<vmem>>, vector<1x16x16xf32>
    %500 = vector.shape_cast %499 : vector<1x16x16xf32> to vector<16x16xf32>
    %501 = vector.broadcast %498 : f32 to vector<16x16xf32>
    %502 = arith.mulf %500, %501 : vector<16x16xf32>
    %503 = arith.addf %491, %502 : vector<16x16xf32>
    %c79 = arith.constant 79 : index
    %504 = memref.load %arg3[%c79] : memref<99xf32, #tpu.memory_space<smem>>
    %c9_326 = arith.constant 9 : index
    %c4_327 = arith.constant 4 : index
    %c0_328 = arith.constant 0 : index
    %505 = vector.load %arg6[%c9_326, %c4_327, %c0_328] : memref<14x22x16xf32, #tpu.memory_space<vmem>>, vector<1x16x16xf32>
    %506 = vector.shape_cast %505 : vector<1x16x16xf32> to vector<16x16xf32>
    %507 = vector.broadcast %504 : f32 to vector<16x16xf32>
    %508 = arith.mulf %506, %507 : vector<16x16xf32>
    %509 = arith.addf %497, %508 : vector<16x16xf32>
    %c86 = arith.constant 86 : index
    %510 = memref.load %arg3[%c86] : memref<99xf32, #tpu.memory_space<smem>>
    %c9_329 = arith.constant 9 : index
    %c5_330 = arith.constant 5 : index
    %c0_331 = arith.constant 0 : index
    %511 = vector.load %arg6[%c9_329, %c5_330, %c0_331] : memref<14x22x16xf32, #tpu.memory_space<vmem>>, vector<1x16x16xf32>
    %512 = vector.shape_cast %511 : vector<1x16x16xf32> to vector<16x16xf32>
    %513 = vector.broadcast %510 : f32 to vector<16x16xf32>
    %514 = arith.mulf %512, %513 : vector<16x16xf32>
    %515 = arith.addf %503, %514 : vector<16x16xf32>
    %c93 = arith.constant 93 : index
    %516 = memref.load %arg3[%c93] : memref<99xf32, #tpu.memory_space<smem>>
    %c9_332 = arith.constant 9 : index
    %c6_333 = arith.constant 6 : index
    %c0_334 = arith.constant 0 : index
    %517 = vector.load %arg6[%c9_332, %c6_333, %c0_334] : memref<14x22x16xf32, #tpu.memory_space<vmem>>, vector<1x16x16xf32>
    %518 = vector.shape_cast %517 : vector<1x16x16xf32> to vector<16x16xf32>
    %519 = vector.broadcast %516 : f32 to vector<16x16xf32>
    %520 = arith.mulf %518, %519 : vector<16x16xf32>
    %521 = arith.addf %509, %520 : vector<16x16xf32>
    %c52 = arith.constant 52 : index
    %522 = memref.load %arg3[%c52] : memref<99xf32, #tpu.memory_space<smem>>
    %c10_335 = arith.constant 10 : index
    %c0_336 = arith.constant 0 : index
    %c0_337 = arith.constant 0 : index
    %523 = vector.load %arg6[%c10_335, %c0_336, %c0_337] : memref<14x22x16xf32, #tpu.memory_space<vmem>>, vector<1x16x16xf32>
    %524 = vector.shape_cast %523 : vector<1x16x16xf32> to vector<16x16xf32>
    %525 = vector.broadcast %522 : f32 to vector<16x16xf32>
    %526 = arith.mulf %524, %525 : vector<16x16xf32>
    %527 = arith.addf %521, %526 : vector<16x16xf32>
    %c59 = arith.constant 59 : index
    %528 = memref.load %arg3[%c59] : memref<99xf32, #tpu.memory_space<smem>>
    %c10_338 = arith.constant 10 : index
    %c1_339 = arith.constant 1 : index
    %c0_340 = arith.constant 0 : index
    %529 = vector.load %arg6[%c10_338, %c1_339, %c0_340] : memref<14x22x16xf32, #tpu.memory_space<vmem>>, vector<1x16x16xf32>
    %530 = vector.shape_cast %529 : vector<1x16x16xf32> to vector<16x16xf32>
    %531 = vector.broadcast %528 : f32 to vector<16x16xf32>
    %532 = arith.mulf %530, %531 : vector<16x16xf32>
    %533 = arith.addf %515, %532 : vector<16x16xf32>
    %c66 = arith.constant 66 : index
    %534 = memref.load %arg3[%c66] : memref<99xf32, #tpu.memory_space<smem>>
    %c10_341 = arith.constant 10 : index
    %c2_342 = arith.constant 2 : index
    %c0_343 = arith.constant 0 : index
    %535 = vector.load %arg6[%c10_341, %c2_342, %c0_343] : memref<14x22x16xf32, #tpu.memory_space<vmem>>, vector<1x16x16xf32>
    %536 = vector.shape_cast %535 : vector<1x16x16xf32> to vector<16x16xf32>
    %537 = vector.broadcast %534 : f32 to vector<16x16xf32>
    %538 = arith.mulf %536, %537 : vector<16x16xf32>
    %539 = arith.addf %527, %538 : vector<16x16xf32>
    %c73 = arith.constant 73 : index
    %540 = memref.load %arg3[%c73] : memref<99xf32, #tpu.memory_space<smem>>
    %c10_344 = arith.constant 10 : index
    %c3_345 = arith.constant 3 : index
    %c0_346 = arith.constant 0 : index
    %541 = vector.load %arg6[%c10_344, %c3_345, %c0_346] : memref<14x22x16xf32, #tpu.memory_space<vmem>>, vector<1x16x16xf32>
    %542 = vector.shape_cast %541 : vector<1x16x16xf32> to vector<16x16xf32>
    %543 = vector.broadcast %540 : f32 to vector<16x16xf32>
    %544 = arith.mulf %542, %543 : vector<16x16xf32>
    %545 = arith.addf %533, %544 : vector<16x16xf32>
    %c80 = arith.constant 80 : index
    %546 = memref.load %arg3[%c80] : memref<99xf32, #tpu.memory_space<smem>>
    %c10_347 = arith.constant 10 : index
    %c4_348 = arith.constant 4 : index
    %c0_349 = arith.constant 0 : index
    %547 = vector.load %arg6[%c10_347, %c4_348, %c0_349] : memref<14x22x16xf32, #tpu.memory_space<vmem>>, vector<1x16x16xf32>
    %548 = vector.shape_cast %547 : vector<1x16x16xf32> to vector<16x16xf32>
    %549 = vector.broadcast %546 : f32 to vector<16x16xf32>
    %550 = arith.mulf %548, %549 : vector<16x16xf32>
    %551 = arith.addf %539, %550 : vector<16x16xf32>
    %c87 = arith.constant 87 : index
    %552 = memref.load %arg3[%c87] : memref<99xf32, #tpu.memory_space<smem>>
    %c10_350 = arith.constant 10 : index
    %c5_351 = arith.constant 5 : index
    %c0_352 = arith.constant 0 : index
    %553 = vector.load %arg6[%c10_350, %c5_351, %c0_352] : memref<14x22x16xf32, #tpu.memory_space<vmem>>, vector<1x16x16xf32>
    %554 = vector.shape_cast %553 : vector<1x16x16xf32> to vector<16x16xf32>
    %555 = vector.broadcast %552 : f32 to vector<16x16xf32>
    %556 = arith.mulf %554, %555 : vector<16x16xf32>
    %557 = arith.addf %545, %556 : vector<16x16xf32>
    %c94 = arith.constant 94 : index
    %558 = memref.load %arg3[%c94] : memref<99xf32, #tpu.memory_space<smem>>
    %c10_353 = arith.constant 10 : index
    %c6_354 = arith.constant 6 : index
    %c0_355 = arith.constant 0 : index
    %559 = vector.load %arg6[%c10_353, %c6_354, %c0_355] : memref<14x22x16xf32, #tpu.memory_space<vmem>>, vector<1x16x16xf32>
    %560 = vector.shape_cast %559 : vector<1x16x16xf32> to vector<16x16xf32>
    %561 = vector.broadcast %558 : f32 to vector<16x16xf32>
    %562 = arith.mulf %560, %561 : vector<16x16xf32>
    %563 = arith.addf %551, %562 : vector<16x16xf32>
    %c53 = arith.constant 53 : index
    %564 = memref.load %arg3[%c53] : memref<99xf32, #tpu.memory_space<smem>>
    %c11_356 = arith.constant 11 : index
    %c0_357 = arith.constant 0 : index
    %c0_358 = arith.constant 0 : index
    %565 = vector.load %arg6[%c11_356, %c0_357, %c0_358] : memref<14x22x16xf32, #tpu.memory_space<vmem>>, vector<1x16x16xf32>
    %566 = vector.shape_cast %565 : vector<1x16x16xf32> to vector<16x16xf32>
    %567 = vector.broadcast %564 : f32 to vector<16x16xf32>
    %568 = arith.mulf %566, %567 : vector<16x16xf32>
    %569 = arith.addf %563, %568 : vector<16x16xf32>
    %c60 = arith.constant 60 : index
    %570 = memref.load %arg3[%c60] : memref<99xf32, #tpu.memory_space<smem>>
    %c11_359 = arith.constant 11 : index
    %c1_360 = arith.constant 1 : index
    %c0_361 = arith.constant 0 : index
    %571 = vector.load %arg6[%c11_359, %c1_360, %c0_361] : memref<14x22x16xf32, #tpu.memory_space<vmem>>, vector<1x16x16xf32>
    %572 = vector.shape_cast %571 : vector<1x16x16xf32> to vector<16x16xf32>
    %573 = vector.broadcast %570 : f32 to vector<16x16xf32>
    %574 = arith.mulf %572, %573 : vector<16x16xf32>
    %575 = arith.addf %557, %574 : vector<16x16xf32>
    %c67 = arith.constant 67 : index
    %576 = memref.load %arg3[%c67] : memref<99xf32, #tpu.memory_space<smem>>
    %c11_362 = arith.constant 11 : index
    %c2_363 = arith.constant 2 : index
    %c0_364 = arith.constant 0 : index
    %577 = vector.load %arg6[%c11_362, %c2_363, %c0_364] : memref<14x22x16xf32, #tpu.memory_space<vmem>>, vector<1x16x16xf32>
    %578 = vector.shape_cast %577 : vector<1x16x16xf32> to vector<16x16xf32>
    %579 = vector.broadcast %576 : f32 to vector<16x16xf32>
    %580 = arith.mulf %578, %579 : vector<16x16xf32>
    %581 = arith.addf %569, %580 : vector<16x16xf32>
    %c74 = arith.constant 74 : index
    %582 = memref.load %arg3[%c74] : memref<99xf32, #tpu.memory_space<smem>>
    %c11_365 = arith.constant 11 : index
    %c3_366 = arith.constant 3 : index
    %c0_367 = arith.constant 0 : index
    %583 = vector.load %arg6[%c11_365, %c3_366, %c0_367] : memref<14x22x16xf32, #tpu.memory_space<vmem>>, vector<1x16x16xf32>
    %584 = vector.shape_cast %583 : vector<1x16x16xf32> to vector<16x16xf32>
    %585 = vector.broadcast %582 : f32 to vector<16x16xf32>
    %586 = arith.mulf %584, %585 : vector<16x16xf32>
    %587 = arith.addf %575, %586 : vector<16x16xf32>
    %c81 = arith.constant 81 : index
    %588 = memref.load %arg3[%c81] : memref<99xf32, #tpu.memory_space<smem>>
    %c11_368 = arith.constant 11 : index
    %c4_369 = arith.constant 4 : index
    %c0_370 = arith.constant 0 : index
    %589 = vector.load %arg6[%c11_368, %c4_369, %c0_370] : memref<14x22x16xf32, #tpu.memory_space<vmem>>, vector<1x16x16xf32>
    %590 = vector.shape_cast %589 : vector<1x16x16xf32> to vector<16x16xf32>
    %591 = vector.broadcast %588 : f32 to vector<16x16xf32>
    %592 = arith.mulf %590, %591 : vector<16x16xf32>
    %593 = arith.addf %581, %592 : vector<16x16xf32>
    %c88 = arith.constant 88 : index
    %594 = memref.load %arg3[%c88] : memref<99xf32, #tpu.memory_space<smem>>
    %c11_371 = arith.constant 11 : index
    %c5_372 = arith.constant 5 : index
    %c0_373 = arith.constant 0 : index
    %595 = vector.load %arg6[%c11_371, %c5_372, %c0_373] : memref<14x22x16xf32, #tpu.memory_space<vmem>>, vector<1x16x16xf32>
    %596 = vector.shape_cast %595 : vector<1x16x16xf32> to vector<16x16xf32>
    %597 = vector.broadcast %594 : f32 to vector<16x16xf32>
    %598 = arith.mulf %596, %597 : vector<16x16xf32>
    %599 = arith.addf %587, %598 : vector<16x16xf32>
    %c95 = arith.constant 95 : index
    %600 = memref.load %arg3[%c95] : memref<99xf32, #tpu.memory_space<smem>>
    %c11_374 = arith.constant 11 : index
    %c6_375 = arith.constant 6 : index
    %c0_376 = arith.constant 0 : index
    %601 = vector.load %arg6[%c11_374, %c6_375, %c0_376] : memref<14x22x16xf32, #tpu.memory_space<vmem>>, vector<1x16x16xf32>
    %602 = vector.shape_cast %601 : vector<1x16x16xf32> to vector<16x16xf32>
    %603 = vector.broadcast %600 : f32 to vector<16x16xf32>
    %604 = arith.mulf %602, %603 : vector<16x16xf32>
    %605 = arith.addf %593, %604 : vector<16x16xf32>
    %c54 = arith.constant 54 : index
    %606 = memref.load %arg3[%c54] : memref<99xf32, #tpu.memory_space<smem>>
    %c12_377 = arith.constant 12 : index
    %c0_378 = arith.constant 0 : index
    %c0_379 = arith.constant 0 : index
    %607 = vector.load %arg6[%c12_377, %c0_378, %c0_379] : memref<14x22x16xf32, #tpu.memory_space<vmem>>, vector<1x16x16xf32>
    %608 = vector.shape_cast %607 : vector<1x16x16xf32> to vector<16x16xf32>
    %609 = vector.broadcast %606 : f32 to vector<16x16xf32>
    %610 = arith.mulf %608, %609 : vector<16x16xf32>
    %611 = arith.addf %605, %610 : vector<16x16xf32>
    %c61 = arith.constant 61 : index
    %612 = memref.load %arg3[%c61] : memref<99xf32, #tpu.memory_space<smem>>
    %c12_380 = arith.constant 12 : index
    %c1_381 = arith.constant 1 : index
    %c0_382 = arith.constant 0 : index
    %613 = vector.load %arg6[%c12_380, %c1_381, %c0_382] : memref<14x22x16xf32, #tpu.memory_space<vmem>>, vector<1x16x16xf32>
    %614 = vector.shape_cast %613 : vector<1x16x16xf32> to vector<16x16xf32>
    %615 = vector.broadcast %612 : f32 to vector<16x16xf32>
    %616 = arith.mulf %614, %615 : vector<16x16xf32>
    %617 = arith.addf %599, %616 : vector<16x16xf32>
    %c68 = arith.constant 68 : index
    %618 = memref.load %arg3[%c68] : memref<99xf32, #tpu.memory_space<smem>>
    %c12_383 = arith.constant 12 : index
    %c2_384 = arith.constant 2 : index
    %c0_385 = arith.constant 0 : index
    %619 = vector.load %arg6[%c12_383, %c2_384, %c0_385] : memref<14x22x16xf32, #tpu.memory_space<vmem>>, vector<1x16x16xf32>
    %620 = vector.shape_cast %619 : vector<1x16x16xf32> to vector<16x16xf32>
    %621 = vector.broadcast %618 : f32 to vector<16x16xf32>
    %622 = arith.mulf %620, %621 : vector<16x16xf32>
    %623 = arith.addf %611, %622 : vector<16x16xf32>
    %c75 = arith.constant 75 : index
    %624 = memref.load %arg3[%c75] : memref<99xf32, #tpu.memory_space<smem>>
    %c12_386 = arith.constant 12 : index
    %c3_387 = arith.constant 3 : index
    %c0_388 = arith.constant 0 : index
    %625 = vector.load %arg6[%c12_386, %c3_387, %c0_388] : memref<14x22x16xf32, #tpu.memory_space<vmem>>, vector<1x16x16xf32>
    %626 = vector.shape_cast %625 : vector<1x16x16xf32> to vector<16x16xf32>
    %627 = vector.broadcast %624 : f32 to vector<16x16xf32>
    %628 = arith.mulf %626, %627 : vector<16x16xf32>
    %629 = arith.addf %617, %628 : vector<16x16xf32>
    %c82 = arith.constant 82 : index
    %630 = memref.load %arg3[%c82] : memref<99xf32, #tpu.memory_space<smem>>
    %c12_389 = arith.constant 12 : index
    %c4_390 = arith.constant 4 : index
    %c0_391 = arith.constant 0 : index
    %631 = vector.load %arg6[%c12_389, %c4_390, %c0_391] : memref<14x22x16xf32, #tpu.memory_space<vmem>>, vector<1x16x16xf32>
    %632 = vector.shape_cast %631 : vector<1x16x16xf32> to vector<16x16xf32>
    %633 = vector.broadcast %630 : f32 to vector<16x16xf32>
    %634 = arith.mulf %632, %633 : vector<16x16xf32>
    %635 = arith.addf %623, %634 : vector<16x16xf32>
    %c89 = arith.constant 89 : index
    %636 = memref.load %arg3[%c89] : memref<99xf32, #tpu.memory_space<smem>>
    %c12_392 = arith.constant 12 : index
    %c5_393 = arith.constant 5 : index
    %c0_394 = arith.constant 0 : index
    %637 = vector.load %arg6[%c12_392, %c5_393, %c0_394] : memref<14x22x16xf32, #tpu.memory_space<vmem>>, vector<1x16x16xf32>
    %638 = vector.shape_cast %637 : vector<1x16x16xf32> to vector<16x16xf32>
    %639 = vector.broadcast %636 : f32 to vector<16x16xf32>
    %640 = arith.mulf %638, %639 : vector<16x16xf32>
    %641 = arith.addf %629, %640 : vector<16x16xf32>
    %c96 = arith.constant 96 : index
    %642 = memref.load %arg3[%c96] : memref<99xf32, #tpu.memory_space<smem>>
    %c12_395 = arith.constant 12 : index
    %c6_396 = arith.constant 6 : index
    %c0_397 = arith.constant 0 : index
    %643 = vector.load %arg6[%c12_395, %c6_396, %c0_397] : memref<14x22x16xf32, #tpu.memory_space<vmem>>, vector<1x16x16xf32>
    %644 = vector.shape_cast %643 : vector<1x16x16xf32> to vector<16x16xf32>
    %645 = vector.broadcast %642 : f32 to vector<16x16xf32>
    %646 = arith.mulf %644, %645 : vector<16x16xf32>
    %647 = arith.addf %635, %646 : vector<16x16xf32>
    %c55 = arith.constant 55 : index
    %648 = memref.load %arg3[%c55] : memref<99xf32, #tpu.memory_space<smem>>
    %c13_398 = arith.constant 13 : index
    %c0_399 = arith.constant 0 : index
    %c0_400 = arith.constant 0 : index
    %649 = vector.load %arg6[%c13_398, %c0_399, %c0_400] : memref<14x22x16xf32, #tpu.memory_space<vmem>>, vector<1x16x16xf32>
    %650 = vector.shape_cast %649 : vector<1x16x16xf32> to vector<16x16xf32>
    %651 = vector.broadcast %648 : f32 to vector<16x16xf32>
    %652 = arith.mulf %650, %651 : vector<16x16xf32>
    %653 = arith.addf %647, %652 : vector<16x16xf32>
    %c62 = arith.constant 62 : index
    %654 = memref.load %arg3[%c62] : memref<99xf32, #tpu.memory_space<smem>>
    %c13_401 = arith.constant 13 : index
    %c1_402 = arith.constant 1 : index
    %c0_403 = arith.constant 0 : index
    %655 = vector.load %arg6[%c13_401, %c1_402, %c0_403] : memref<14x22x16xf32, #tpu.memory_space<vmem>>, vector<1x16x16xf32>
    %656 = vector.shape_cast %655 : vector<1x16x16xf32> to vector<16x16xf32>
    %657 = vector.broadcast %654 : f32 to vector<16x16xf32>
    %658 = arith.mulf %656, %657 : vector<16x16xf32>
    %659 = arith.addf %641, %658 : vector<16x16xf32>
    %c69 = arith.constant 69 : index
    %660 = memref.load %arg3[%c69] : memref<99xf32, #tpu.memory_space<smem>>
    %c13_404 = arith.constant 13 : index
    %c2_405 = arith.constant 2 : index
    %c0_406 = arith.constant 0 : index
    %661 = vector.load %arg6[%c13_404, %c2_405, %c0_406] : memref<14x22x16xf32, #tpu.memory_space<vmem>>, vector<1x16x16xf32>
    %662 = vector.shape_cast %661 : vector<1x16x16xf32> to vector<16x16xf32>
    %663 = vector.broadcast %660 : f32 to vector<16x16xf32>
    %664 = arith.mulf %662, %663 : vector<16x16xf32>
    %665 = arith.addf %653, %664 : vector<16x16xf32>
    %c76 = arith.constant 76 : index
    %666 = memref.load %arg3[%c76] : memref<99xf32, #tpu.memory_space<smem>>
    %c13_407 = arith.constant 13 : index
    %c3_408 = arith.constant 3 : index
    %c0_409 = arith.constant 0 : index
    %667 = vector.load %arg6[%c13_407, %c3_408, %c0_409] : memref<14x22x16xf32, #tpu.memory_space<vmem>>, vector<1x16x16xf32>
    %668 = vector.shape_cast %667 : vector<1x16x16xf32> to vector<16x16xf32>
    %669 = vector.broadcast %666 : f32 to vector<16x16xf32>
    %670 = arith.mulf %668, %669 : vector<16x16xf32>
    %671 = arith.addf %659, %670 : vector<16x16xf32>
    %c83 = arith.constant 83 : index
    %672 = memref.load %arg3[%c83] : memref<99xf32, #tpu.memory_space<smem>>
    %c13_410 = arith.constant 13 : index
    %c4_411 = arith.constant 4 : index
    %c0_412 = arith.constant 0 : index
    %673 = vector.load %arg6[%c13_410, %c4_411, %c0_412] : memref<14x22x16xf32, #tpu.memory_space<vmem>>, vector<1x16x16xf32>
    %674 = vector.shape_cast %673 : vector<1x16x16xf32> to vector<16x16xf32>
    %675 = vector.broadcast %672 : f32 to vector<16x16xf32>
    %676 = arith.mulf %674, %675 : vector<16x16xf32>
    %677 = arith.addf %665, %676 : vector<16x16xf32>
    %c90 = arith.constant 90 : index
    %678 = memref.load %arg3[%c90] : memref<99xf32, #tpu.memory_space<smem>>
    %c13_413 = arith.constant 13 : index
    %c5_414 = arith.constant 5 : index
    %c0_415 = arith.constant 0 : index
    %679 = vector.load %arg6[%c13_413, %c5_414, %c0_415] : memref<14x22x16xf32, #tpu.memory_space<vmem>>, vector<1x16x16xf32>
    %680 = vector.shape_cast %679 : vector<1x16x16xf32> to vector<16x16xf32>
    %681 = vector.broadcast %678 : f32 to vector<16x16xf32>
    %682 = arith.mulf %680, %681 : vector<16x16xf32>
    %683 = arith.addf %671, %682 : vector<16x16xf32>
    %c97 = arith.constant 97 : index
    %684 = memref.load %arg3[%c97] : memref<99xf32, #tpu.memory_space<smem>>
    %c13_416 = arith.constant 13 : index
    %c6_417 = arith.constant 6 : index
    %c0_418 = arith.constant 0 : index
    %685 = vector.load %arg6[%c13_416, %c6_417, %c0_418] : memref<14x22x16xf32, #tpu.memory_space<vmem>>, vector<1x16x16xf32>
    %686 = vector.shape_cast %685 : vector<1x16x16xf32> to vector<16x16xf32>
    %687 = vector.broadcast %684 : f32 to vector<16x16xf32>
    %688 = arith.mulf %686, %687 : vector<16x16xf32>
    %689 = arith.addf %677, %688 : vector<16x16xf32>
    %690 = arith.addf %395, %389 : vector<16x16xf32>
    %691 = arith.addf %689, %683 : vector<16x16xf32>
    %692 = arith.addf %690, %691 : vector<16x16xf32>
    %c98 = arith.constant 98 : index
    %693 = memref.load %arg3[%c98] : memref<99xf32, #tpu.memory_space<smem>>
    %694 = vector.broadcast %693 : f32 to vector<16x16xf32>
    %695 = arith.addf %692, %694 : vector<16x16xf32>
    %696 = vector.shape_cast %695 : vector<16x16xf32> to vector<1x1x16x16xf32>
    %c0_419 = arith.constant 0 : index
    %c0_420 = arith.constant 0 : index
    %c0_421 = arith.constant 0 : index
    %c0_422 = arith.constant 0 : index
    %697 = vector.load %arg4[%c0_419, %c0_420, %c0_421, %c0_422] : memref<1x1x16x16xf32, #tpu.memory_space<vmem>>, vector<1x1x16x16xf32>
    tpu.vector_store %arg4[%c0_419, %c0_420, %c0_421, %c0_422], %696 {strides = array<i32>} : memref<1x1x16x16xf32, #tpu.memory_space<vmem>>, vector<1x1x16x16xf32>,
    return
  }
  func.func @transform_0(%arg0: i32, %arg1: i32) -> (i32, i32, i32, i32) {
    %c0_i32 = arith.constant 0 : i32
    %c0_i32_0 = arith.constant 0 : i32
    %c0_i32_1 = arith.constant 0 : i32
    return %arg0, %arg1, %c0_i32, %c0_i32_0 : i32, i32, i32, i32
  }
  func.func @transform_1(%arg0: i32, %arg1: i32) -> i32 {
    %c0_i32 = arith.constant 0 : i32
    %c0_i32_0 = arith.constant 0 : i32
    return %c0_i32 : i32
  }
  func.func @transform_2(%arg0: i32, %arg1: i32) -> (i32, i32, i32, i32) {
    %c0_i32 = arith.constant 0 : i32
    %c0_i32_0 = arith.constant 0 : i32
    %c0_i32_1 = arith.constant 0 : i32
    %c0_i32_2 = arith.constant 0 : i32
    return %arg0, %c0_i32, %c0_i32_0, %c0_i32_1 : i32, i32, i32, i32
  }
}

</mosaic_0001>

<llo_original>
// kernel: tpu_custom_call.1
$region0: #{tpu_custom_call.1}
  #allocation0 [shape = 'u32[]', space=smem, size = 0x4, offset = 0x4, fixed_abs, tag = 'smem constant byte address 0x4 - core index']
  #allocation1 [shape = 'u32[144,128]{1,0:T(1,128)}', space=vmem, size = 0x12000, scoped, tag = 'internal scratch']
  #allocation2 [shape = 'f32[2,22,22]{2,1,0:T(8,128)}', space=vmem, size = 0x6000, scoped, tag = 'scratch operand']
  #allocation3 [shape = 'f32[14,22,16]{2,1,0:T(8,128)}', space=vmem, size = 0x2a000, scoped, tag = 'scratch operand']
  %s0 = inlined_call_operand.hbm [shape: f32[2,4,16,16], index: 0, kind: input, shape index: {}]
  %s1 = inlined_call_operand.vmem [shape: f32[99], index: 1, kind: input, shape index: {}]
  %s2 = inlined_call_operand.hbm [shape: f32[2,1,16,16], index: 2, kind: output, shape index: {}]
  %s3 = sld [smem:[#allocation0]]
  $region49: #{tpu_custom_call.1} parent=0
    _
  %s5 = ssub.s32 1, %s3
  %s6 = scalar_select 0, %s5, %s3
  $region1: #{tpu_custom_call.1} parent=0
    #allocation4 [shape = 'u8[65536]{0}', space=vmem, size = 0x10000, scoped, tag = 'input window, operand 0']
    #allocation5 [shape = 's32[2]{0}', space=sflag, size = 0x8, scoped, tag = 'scoped memory for tpu_custom_call.1']
    #allocation6 [shape = 's32[2]{0}', space=sflag, size = 0x8, scoped, tag = 'scoped memory for tpu_custom_call.1']
    #allocation7 [shape = 's32[2]{0}', space=sflag, size = 0x8, scoped, tag = 'scoped memory for tpu_custom_call.1']
    #allocation8 [shape = 'u8[512]{0}', space=smem, size = 0x200, scoped, tag = 'input window, operand 1, single buffered']
    #allocation9 [shape = 'u8[16384]{0}', space=vmem, size = 0x4000, scoped, tag = 'output window, operand 0']
    %7 = vsyncpa [#allocation5], 0
    %s8 = scalar_lea.sflag [#allocation5], 1
    %9 = vsyncpa %s8, 0
    %10 = vsyncpa [#allocation7], 0
    %11 = vsyncpa [#allocation6], 0
    %s12 = scalar_lea.sflag [#allocation6], 1
    %13 = vsyncpa %s12, 0
    loop: start=0, step=1, limit=4
    $region2: #{tpu_custom_call.1} parent=1 // loop_pre_header
      _
    $region3: #{tpu_custom_call.1} parent=1 // loop_header
      %s15 = sphi 0, %s19
      %p16 = scmp.ge.s32.totalorder %s15, 4
      %s22 = sphi 0, %s34
      %s23 = sphi 0, %s30
      %s24 = sphi 0, %s22
      %s25 = sphi 0, %s23
      %s26 = sphi 0, %s24
      %s27 = sphi 0, %s25
      %s39 = sphi 0, %s41
      %s42 = sphi 0, %s39
      %s43 = sphi 0, %s42
      %s59 = sphi 0, %s43
      %s63 = sphi 0, %s63
      %s65 = sphi 0, %s63
      %s66 = sphi 0, %s65
      %s80 = sphi 0, %s66
      %s86 = sphi 0, %s88
      %s89 = sphi 0, %s86
      %s90 = sphi 0, %s89
      %s106 = sphi 0, %s90
    $region4: #{tpu_custom_call.1} parent=1 // loop_header_branch
      %18 = sbr.rel (%p16) target = $region8
    $region5: #{tpu_custom_call.1} parent=1 // loop_body
      %s20 = ssub.s32 %s15, 1
      %s21 = ssub.s32 %s15, 2
      %s28 = sadd.s32 1, %s23
      %p29 = scmp.ge.s32.totalorder %s28, 1
      %s30 = scalar_select %p29, 0, %s28
      %s31 = sadd.s32 1, %s22
      %s32 = scalar_select %p29, %s31, %s22
      %p33 = scmp.ge.s32.totalorder %s32, 2
      %s34 = scalar_select %p33, 0, %s32
      %s35 = ssub.s32 %s22, %s34
      %s36 = ssub.s32 %s23, %s30
      %s37 = sor.u32 %s35, %s36
      %p38 = scmp.eq.s32.totalorder %s37, 0
      %s40 = sadd.s32 %s39, 1
      %s41 = scalar_select %p38, %s39, %s40
      %p44 = pneg %p38
      %p45 = scmp.eq.s32.totalorder %s15, 1
      %p46 = por %p44, %p45
      %p47 = scmp.ne.s32.totalorder %s39, %s42
      %p48 = scmp.eq.s32.totalorder %s15, 0
      %p49 = por %p47, %p48
      %p50 = scmp.ne.s32.totalorder %s39, %s42
      %p51 = scmp.eq.s32.totalorder %s20, 1
      %p52 = por %p50, %p51
      %p53 = scmp.ne.s32.totalorder %s42, %s43
      %p54 = scmp.eq.s32.totalorder %s20, 0
      %p55 = por %p53, %p54
      %p56 = scmp.ne.s32.totalorder %s42, %s43
      %p57 = scmp.eq.s32.totalorder %s21, 1
      %p58 = por %p56, %p57
      %p60 = scmp.ne.s32.totalorder %s43, %s59
      %p61 = scmp.eq.s32.totalorder %s21, 0
      %p62 = por %p60, %p61
      %s64 = sadd.s32 %s63, 1
      %p67 = scmp.eq.s32.totalorder %s15, 1
      %p68 = scmp.ne.s32.totalorder %s63, %s65
      %p69 = scmp.eq.s32.totalorder %s15, 0
      %p70 = por %p68, %p69
      %p71 = scmp.ne.s32.totalorder %s63, %s65
      %p72 = scmp.eq.s32.totalorder %s20, 1
      %p73 = por %p71, %p72
      %p74 = scmp.ne.s32.totalorder %s65, %s66
      %p75 = scmp.eq.s32.totalorder %s20, 0
      %p76 = por %p74, %p75
      %p77 = scmp.ne.s32.totalorder %s65, %s66
      %p78 = scmp.eq.s32.totalorder %s21, 1
      %p79 = por %p77, %p78
      %p81 = scmp.ne.s32.totalorder %s66, %s80
      %p82 = scmp.eq.s32.totalorder %s21, 0
      %p83 = por %p81, %p82
      %s84 = ssub.s32 %s22, %s34
      %p85 = scmp.eq.s32.totalorder %s84, 0
      %s87 = sadd.s32 %s86, 1
      %s88 = scalar_select %p85, %s86, %s87
      %p91 = pneg %p85
      %p92 = scmp.eq.s32.totalorder %s15, 1
      %p93 = por %p91, %p92
      %p94 = scmp.ne.s32.totalorder %s86, %s89
      %p95 = scmp.eq.s32.totalorder %s15, 0
      %p96 = por %p94, %p95
      %p97 = scmp.ne.s32.totalorder %s86, %s89
      %p98 = scmp.eq.s32.totalorder %s20, 1
      %p99 = por %p97, %p98
      %p100 = scmp.ne.s32.totalorder %s89, %s90
      %p101 = scmp.eq.s32.totalorder %s20, 0
      %p102 = por %p100, %p101
      %p103 = scmp.ne.s32.totalorder %s89, %s90
      %p104 = scmp.eq.s32.totalorder %s21, 1
      %p105 = por %p103, %p104
      %p107 = scmp.ne.s32.totalorder %s90, %s106
      %p108 = scmp.eq.s32.totalorder %s21, 0
      %p109 = por %p107, %p108
      %p110 = scmp.le.s32.totalorder 1, %s15
      %p111 = scmp.lt.s32.totalorder %s15, 3
      %p112 = pnand %p110, %p111
      %p113 = pneg %p112
      // Predicated region
      $region9: #{tpu_custom_call.1} parent=5 // pred_check
        _
      $region10: #{tpu_custom_call.1} parent=5 // pred_check_branch
        %115 = sbr.rel (%p112) target = $region12
      $region11: #{tpu_custom_call.1} parent=5 // pred_region
        %s116 = ssub.s32 %s15, 1
        // Predicated region
        $region13: #{tpu_custom_call.1} parent=11 // pred_check
          %p117 = pneg %p76
        $region14: #{tpu_custom_call.1} parent=11 // pred_check_branch
          %119 = sbr.rel (%p117) target = $region16
        $region15: #{tpu_custom_call.1} parent=11 // pred_region
          %s121 = ssub.s32 16, 16
          %122 = vsyncadd [#allocation7], %s121
          %s124 = sshll.u32 %s1, 4
          %s125 = int_to_ptr.vmem [resolvable:$true] %s124
          %127 = dma.vmem_to_smem %s125, 16, [#allocation8], [#allocation7]
        $region16: #{tpu_custom_call.1} parent=11 // pred_fallthru
          _
      $region12: #{tpu_custom_call.1} parent=5 // pred_fallthru
        _
      %p128 = scmp.lt.s32.totalorder %s15, 2
      // Predicated region
      $region17: #{tpu_custom_call.1} parent=5 // pred_check
        %p129 = pneg %p128
      $region18: #{tpu_custom_call.1} parent=5 // pred_check_branch
        %131 = sbr.rel (%p129) target = $region20
      $region19: #{tpu_custom_call.1} parent=5 // pred_region
        // Predicated region
        $region21: #{tpu_custom_call.1} parent=19 // pred_check
          %p132 = pneg %p49
        $region22: #{tpu_custom_call.1} parent=19 // pred_check_branch
          %134 = sbr.rel (%p132) target = $region24
        $region23: #{tpu_custom_call.1} parent=19 // pred_region
          %s135 = sand.u32 %s39, 1
          %s136 = scalar_lea.sflag [#allocation5], %s135
          %s137 = sand.u32 %s39, 1
          %s138 = smul.addr %s137, 64
          %s139 = scalar_lea.vmem [#allocation4], %s138
          %s140 = smul.u32 4, %s23
          %s142 = ssub.s32 1024, 1024
          %143 = vsyncadd %s136, %s142
          %s144 = smul.addr %s140, 2
          %s145 = smul.addr %s22, 8
          %s146 = sadd.s32 %s144, %s145
          %s147 = smul.addr %s146, 128
          %s148 = scalar_lea.hbm %s0, %s147
          %s149 = sshll.u32 %s139, 4
          %s150 = int_to_ptr.vmem [resolvable:$true] %s149
          %155 = dma.hbm_to_vmem [thread:$0]  %s148, 1024, %s150, %s136, 128, 128, 8
        $region24: #{tpu_custom_call.1} parent=19 // pred_fallthru
          _
      $region20: #{tpu_custom_call.1} parent=5 // pred_fallthru
        _
      %p156 = scmp.le.s32.totalorder 1, %s15
      %p157 = scmp.lt.s32.totalorder %s15, 3
      %p158 = pnand %p156, %p157
      %p159 = pneg %p158
      // Predicated region
      $region25: #{tpu_custom_call.1} parent=5 // pred_check
        _
      $region26: #{tpu_custom_call.1} parent=5 // pred_check_branch
        %161 = sbr.rel (%p158) target = $region28
      $region27: #{tpu_custom_call.1} parent=5 // pred_region
        %s162 = ssub.s32 %s15, 1
        %s163 = sand.u32 %s42, 1
        %s164 = scalar_lea.sflag [#allocation5], %s163
        %s165 = sand.u32 %s42, 1
        %s166 = smul.addr %s165, 64
        %s167 = scalar_lea.vmem [#allocation4], %s166
        // Predicated region
        $region29: #{tpu_custom_call.1} parent=27 // pred_check
          %p168 = pneg %p55
        $region30: #{tpu_custom_call.1} parent=27 // pred_check_branch
          %170 = sbr.rel (%p168) target = $region32
        $region31: #{tpu_custom_call.1} parent=27 // pred_region
          %171 = dma.done %s164, 1024
        $region32: #{tpu_custom_call.1} parent=27 // pred_fallthru
          _
        // Predicated region
        $region33: #{tpu_custom_call.1} parent=27 // pred_check
          %p172 = pneg %p76
        $region34: #{tpu_custom_call.1} parent=27 // pred_check_branch
          %174 = sbr.rel (%p172) target = $region36
        $region35: #{tpu_custom_call.1} parent=27 // pred_region
          %175 = dma.done [#allocation7], 16
        $region36: #{tpu_custom_call.1} parent=27 // pred_fallthru
          _
        %176 = sfence
        %s177 = sand.u32 %s42, 1
        %s178 = scalar_lea.sflag [#allocation5], %s177
        %s179 = sand.u32 %s42, 1
        %s180 = smul.addr %s179, 64
        %s181 = scalar_lea.vmem [#allocation4], %s180
        %p182 = pneg %p55
        %p183 = pneg %p52
        %p184 = pneg %p76
        %p185 = pneg %p73
        %p186 = pneg %p102
        %p187 = pneg %p99
        %s188 = sand.u32 %s89, 1
        %s189 = scalar_lea.sflag [#allocation6], %s188
        %s190 = sand.u32 %s89, 1
        %s191 = smul.addr %s190, 16
        %s192 = scalar_lea.vmem [#allocation9], %s191
        %s193 = smul.u32 4, %s25
        %v194 = vld [vmem:[%s167] sm:$0xff]
        %v195 = vld [vmem:[%s167 + $0x8] sm:$0xff]
        %s196 = scalar_lea.vmem %s167, 16 [#allocation4]
        %v197 = vld [vmem:[%s196] sm:$0xff]
        %v198 = vld [vmem:[%s196 + $0x8] sm:$0xff]
        %v199 = vadd.f32 %v194, %v197
        %v200 = vadd.f32 %v195, %v198
        %v201 = vmax.f32 %v194, %v197
        %v202 = vmax.f32 %v195, %v198
        %s203 = scalar_lea.vmem %s167, 32 [#allocation4]
        %v204 = vld [vmem:[%s203] sm:$0xff]
        %v205 = vld [vmem:[%s203 + $0x8] sm:$0xff]
        %v206 = vadd.f32 %v199, %v204
        %v207 = vadd.f32 %v200, %v205
        %v208 = vmax.f32 %v201, %v204
        %v209 = vmax.f32 %v202, %v205
        %s210 = scalar_lea.vmem %s167, 48 [#allocation4]
        %v211 = vld [vmem:[%s210] sm:$0xff]
        %v212 = vld [vmem:[%s210 + $0x8] sm:$0xff]
        %v213 = vadd.f32 %v206, %v211
        %v214 = vadd.f32 %v207, %v212
        %v215 = vmax.f32 %v208, %v211
        %v216 = vmax.f32 %v209, %v212
        %vm217 = vcmask 174080
        %218 = vst.msk [vmem:[#allocation2] sm:$0x7] %vm217, 0.0
        %219 = vst.msk [vmem:[#allocation2 + $0x18] sm:$0x7] %vm217, 0.0
        %220 = vst.msk [vmem:[#allocation2 + $0x13] sm:$0x7] %vm217, 0.0
        %221 = vst.msk [vmem:[#allocation2 + $0x2b] sm:$0x7] %vm217, 0.0
        %vm222 = vcmask 23552
        %223 = vst.msk [vmem:[#allocation2 + $0x3] sm:$0xff] %vm222, 0.0
        %224 = vst.msk [vmem:[#allocation2 + $0xb] sm:$0xff] %vm222, 0.0
        %225 = vst.msk [vmem:[#allocation2 + $0x1b] sm:$0xff] %vm222, 0.0
        %226 = vst.msk [vmem:[#allocation2 + $0x23] sm:$0xff] %vm222, 0.0
        %vm227 = vcmask 179352
        %228 = vst.msk [vmem:[#allocation2 + $0x3] sm:$0xff] %vm227, 0.0
        %229 = vst.msk [vmem:[#allocation2 + $0xb] sm:$0xff] %vm227, 0.0
        %230 = vst.msk [vmem:[#allocation2 + $0x1b] sm:$0xff] %vm227, 0.0
        %231 = vst.msk [vmem:[#allocation2 + $0x23] sm:$0xff] %vm227, 0.0
        %234 = vrot.lane.b32.xlu0 %v213, 3
        %v235 = vpop.permute.xlu0 %234
        %236 = vrot.lane.b32.xlu0 %v214, 3
        %v237 = vpop.permute.xlu0 %236
        %vm240 = vcmask 154648
        %241 = vst.msk [vmem:[#allocation2 + $0x3] sm:$0xff] %vm240, %v235
        %242 = vst.msk [vmem:[#allocation2 + $0xb] sm:$0xff] %vm240, %v237
        %245 = vrot.lane.b32.xlu0 %v215, 3
        %v246 = vpop.permute.xlu0 %245
        %247 = vrot.lane.b32.xlu0 %v216, 3
        %v248 = vpop.permute.xlu0 %247
        %s251 = scalar_lea.vmem [#allocation2], 24
        %252 = vst.msk [vmem:[%s251 + $0x3] sm:$0xff] %vm240, %v246
        %253 = vst.msk [vmem:[%s251 + $0xb] sm:$0xff] %vm240, %v248
        %v254 = vld [vmem:[#allocation2] sm:$0xff]
        %v255 = vld [vmem:[#allocation2 + $0x8] sm:$0xff]
        %v256 = vld [vmem:[#allocation2 + $0x10] sm:$0x3f]
        %vm257 = vcmask 130048
        %258 = vst.msk [vmem:[#allocation3] sm:$0xff] %vm257, %v254
        %259 = vst.msk [vmem:[#allocation3 + $0x8] sm:$0xff] %vm257, %v255
        %vm260 = vcmask 128000
        %261 = vst.msk [vmem:[#allocation3 + $0x10] sm:$0x3f] %vm260, %v256
        %v262 = vld [vmem:[#allocation2] sm:$0xff]
        %v263 = vld [vmem:[#allocation2 + $0x8] sm:$0xff]
        %v264 = vld [vmem:[#allocation2 + $0x10] sm:$0x3f]
        %268 = vrot.lane.b32.xlu0 %v262, 127
        %v269 = vpop.permute.xlu0 %268
        %270 = vrot.lane.b32.xlu0 %v263, 127
        %v271 = vpop.permute.xlu0 %270
        %272 = vrot.lane.b32.xlu0 %v264, 127
        %v273 = vpop.permute.xlu0 %272
        %s277 = scalar_lea.vmem [#allocation3], 24
        %278 = vst.msk [vmem:[%s277] sm:$0xff] %vm257, %v269
        %279 = vst.msk [vmem:[%s277 + $0x8] sm:$0xff] %vm257, %v271
        %280 = vst.msk [vmem:[%s277 + $0x10] sm:$0x3f] %vm260, %v273
        %v281 = vld [vmem:[#allocation2] sm:$0xff]
        %v282 = vld [vmem:[#allocation2 + $0x8] sm:$0xff]
        %v283 = vld [vmem:[#allocation2 + $0x10] sm:$0x3f]
        %287 = vrot.lane.b32.xlu0 %v281, 126
        %v288 = vpop.permute.xlu0 %287
        %289 = vrot.lane.b32.xlu0 %v282, 126
        %v290 = vpop.permute.xlu0 %289
        %291 = vrot.lane.b32.xlu0 %v283, 126
        %v292 = vpop.permute.xlu0 %291
        %s296 = scalar_lea.vmem [#allocation3], 48
        %297 = vst.msk [vmem:[%s296] sm:$0xff] %vm257, %v288
        %298 = vst.msk [vmem:[%s296 + $0x8] sm:$0xff] %vm257, %v290
        %299 = vst.msk [vmem:[%s296 + $0x10] sm:$0x3f] %vm260, %v292
        %v300 = vld [vmem:[#allocation2] sm:$0xff]
        %v301 = vld [vmem:[#allocation2 + $0x8] sm:$0xff]
        %v302 = vld [vmem:[#allocation2 + $0x10] sm:$0x3f]
        %306 = vrot.lane.b32.xlu0 %v300, 125
        %v307 = vpop.permute.xlu0 %306
        %308 = vrot.lane.b32.xlu0 %v301, 125
        %v309 = vpop.permute.xlu0 %308
        %310 = vrot.lane.b32.xlu0 %v302, 125
        %v311 = vpop.permute.xlu0 %310
        %s315 = scalar_lea.vmem [#allocation3], 72
        %316 = vst.msk [vmem:[%s315] sm:$0xff] %vm257, %v307
        %317 = vst.msk [vmem:[%s315 + $0x8] sm:$0xff] %vm257, %v309
        %318 = vst.msk [vmem:[%s315 + $0x10] sm:$0x3f] %vm260, %v311
        %v319 = vld [vmem:[#allocation2] sm:$0xff]
        %v320 = vld [vmem:[#allocation2 + $0x8] sm:$0xff]
        %v321 = vld [vmem:[#allocation2 + $0x10] sm:$0x3f]
        %325 = vrot.lane.b32.xlu0 %v319, 124
        %v326 = vpop.permute.xlu0 %325
        %327 = vrot.lane.b32.xlu0 %v320, 124
        %v328 = vpop.permute.xlu0 %327
        %329 = vrot.lane.b32.xlu0 %v321, 124
        %v330 = vpop.permute.xlu0 %329
        %s334 = scalar_lea.vmem [#allocation3], 96
        %335 = vst.msk [vmem:[%s334] sm:$0xff] %vm257, %v326
        %336 = vst.msk [vmem:[%s334 + $0x8] sm:$0xff] %vm257, %v328
        %337 = vst.msk [vmem:[%s334 + $0x10] sm:$0x3f] %vm260, %v330
        %v338 = vld [vmem:[#allocation2] sm:$0xff]
        %v339 = vld [vmem:[#allocation2 + $0x8] sm:$0xff]
        %v340 = vld [vmem:[#allocation2 + $0x10] sm:$0x3f]
        %344 = vrot.lane.b32.xlu0 %v338, 123
        %v345 = vpop.permute.xlu0 %344
        %346 = vrot.lane.b32.xlu0 %v339, 123
        %v347 = vpop.permute.xlu0 %346
        %348 = vrot.lane.b32.xlu0 %v340, 123
        %v349 = vpop.permute.xlu0 %348
        %s353 = scalar_lea.vmem [#allocation3], 120
        %354 = vst.msk [vmem:[%s353] sm:$0xff] %vm257, %v345
        %355 = vst.msk [vmem:[%s353 + $0x8] sm:$0xff] %vm257, %v347
        %356 = vst.msk [vmem:[%s353 + $0x10] sm:$0x3f] %vm260, %v349
        %v357 = vld [vmem:[#allocation2] sm:$0xff]
        %v358 = vld [vmem:[#allocation2 + $0x8] sm:$0xff]
        %v359 = vld [vmem:[#allocation2 + $0x10] sm:$0x3f]
        %363 = vrot.lane.b32.xlu0 %v357, 122
        %v364 = vpop.permute.xlu0 %363
        %365 = vrot.lane.b32.xlu0 %v358, 122
        %v366 = vpop.permute.xlu0 %365
        %367 = vrot.lane.b32.xlu0 %v359, 122
        %v368 = vpop.permute.xlu0 %367
        %s372 = scalar_lea.vmem [#allocation3], 144
        %373 = vst.msk [vmem:[%s372] sm:$0xff] %vm257, %v364
        %374 = vst.msk [vmem:[%s372 + $0x8] sm:$0xff] %vm257, %v366
        %375 = vst.msk [vmem:[%s372 + $0x10] sm:$0x3f] %vm260, %v368
        %v376 = vld [vmem:[%s251] sm:$0xff]
        %v377 = vld [vmem:[%s251 + $0x8] sm:$0xff]
        %v378 = vld [vmem:[%s251 + $0x10] sm:$0x3f]
        %s379 = scalar_lea.vmem [#allocation3], 168
        %380 = vst.msk [vmem:[%s379] sm:$0xff] %vm257, %v376
        %381 = vst.msk [vmem:[%s379 + $0x8] sm:$0xff] %vm257, %v377
        %382 = vst.msk [vmem:[%s379 + $0x10] sm:$0x3f] %vm260, %v378
        %v383 = vld [vmem:[%s251] sm:$0xff]
        %v384 = vld [vmem:[%s251 + $0x8] sm:$0xff]
        %v385 = vld [vmem:[%s251 + $0x10] sm:$0x3f]
        %389 = vrot.lane.b32.xlu0 %v383, 127
        %v390 = vpop.permute.xlu0 %389
        %391 = vrot.lane.b32.xlu0 %v384, 127
        %v392 = vpop.permute.xlu0 %391
        %393 = vrot.lane.b32.xlu0 %v385, 127
        %v394 = vpop.permute.xlu0 %393
        %s398 = scalar_lea.vmem [#allocation3], 192
        %399 = vst.msk [vmem:[%s398] sm:$0xff] %vm257, %v390
        %400 = vst.msk [vmem:[%s398 + $0x8] sm:$0xff] %vm257, %v392
        %401 = vst.msk [vmem:[%s398 + $0x10] sm:$0x3f] %vm260, %v394
        %v402 = vld [vmem:[%s251] sm:$0xff]
        %v403 = vld [vmem:[%s251 + $0x8] sm:$0xff]
        %v404 = vld [vmem:[%s251 + $0x10] sm:$0x3f]
        %408 = vrot.lane.b32.xlu0 %v402, 126
        %v409 = vpop.permute.xlu0 %408
        %410 = vrot.lane.b32.xlu0 %v403, 126
        %v411 = vpop.permute.xlu0 %410
        %412 = vrot.lane.b32.xlu0 %v404, 126
        %v413 = vpop.permute.xlu0 %412
        %s417 = scalar_lea.vmem [#allocation3], 216
        %418 = vst.msk [vmem:[%s417] sm:$0xff] %vm257, %v409
        %419 = vst.msk [vmem:[%s417 + $0x8] sm:$0xff] %vm257, %v411
        %420 = vst.msk [vmem:[%s417 + $0x10] sm:$0x3f] %vm260, %v413
        %v421 = vld [vmem:[%s251] sm:$0xff]
        %v422 = vld [vmem:[%s251 + $0x8] sm:$0xff]
        %v423 = vld [vmem:[%s251 + $0x10] sm:$0x3f]
        %427 = vrot.lane.b32.xlu0 %v421, 125
        %v428 = vpop.permute.xlu0 %427
        %429 = vrot.lane.b32.xlu0 %v422, 125
        %v430 = vpop.permute.xlu0 %429
        %431 = vrot.lane.b32.xlu0 %v423, 125
        %v432 = vpop.permute.xlu0 %431
        %s436 = scalar_lea.vmem [#allocation3], 240
        %437 = vst.msk [vmem:[%s436] sm:$0xff] %vm257, %v428
        %438 = vst.msk [vmem:[%s436 + $0x8] sm:$0xff] %vm257, %v430
        %439 = vst.msk [vmem:[%s436 + $0x10] sm:$0x3f] %vm260, %v432
        %v440 = vld [vmem:[%s251] sm:$0xff]
        %v441 = vld [vmem:[%s251 + $0x8] sm:$0xff]
        %v442 = vld [vmem:[%s251 + $0x10] sm:$0x3f]
        %446 = vrot.lane.b32.xlu0 %v440, 124
        %v447 = vpop.permute.xlu0 %446
        %448 = vrot.lane.b32.xlu0 %v441, 124
        %v449 = vpop.permute.xlu0 %448
        %450 = vrot.lane.b32.xlu0 %v442, 124
        %v451 = vpop.permute.xlu0 %450
        %s455 = scalar_lea.vmem [#allocation3], 264
        %456 = vst.msk [vmem:[%s455] sm:$0xff] %vm257, %v447
        %457 = vst.msk [vmem:[%s455 + $0x8] sm:$0xff] %vm257, %v449
        %458 = vst.msk [vmem:[%s455 + $0x10] sm:$0x3f] %vm260, %v451
        %v459 = vld [vmem:[%s251] sm:$0xff]
        %v460 = vld [vmem:[%s251 + $0x8] sm:$0xff]
        %v461 = vld [vmem:[%s251 + $0x10] sm:$0x3f]
        %465 = vrot.lane.b32.xlu0 %v459, 123
        %v466 = vpop.permute.xlu0 %465
        %467 = vrot.lane.b32.xlu0 %v460, 123
        %v468 = vpop.permute.xlu0 %467
        %469 = vrot.lane.b32.xlu0 %v461, 123
        %v470 = vpop.permute.xlu0 %469
        %s474 = scalar_lea.vmem [#allocation3], 288
        %475 = vst.msk [vmem:[%s474] sm:$0xff] %vm257, %v466
        %476 = vst.msk [vmem:[%s474 + $0x8] sm:$0xff] %vm257, %v468
        %477 = vst.msk [vmem:[%s474 + $0x10] sm:$0x3f] %vm260, %v470
        %v478 = vld [vmem:[%s251] sm:$0xff]
        %v479 = vld [vmem:[%s251 + $0x8] sm:$0xff]
        %v480 = vld [vmem:[%s251 + $0x10] sm:$0x3f]
        %484 = vrot.lane.b32.xlu0 %v478, 122
        %v485 = vpop.permute.xlu0 %484
        %486 = vrot.lane.b32.xlu0 %v479, 122
        %v487 = vpop.permute.xlu0 %486
        %488 = vrot.lane.b32.xlu0 %v480, 122
        %v489 = vpop.permute.xlu0 %488
        %s493 = scalar_lea.vmem [#allocation3], 312
        %494 = vst.msk [vmem:[%s493] sm:$0xff] %vm257, %v485
        %495 = vst.msk [vmem:[%s493 + $0x8] sm:$0xff] %vm257, %v487
        %496 = vst.msk [vmem:[%s493 + $0x10] sm:$0x3f] %vm260, %v489
        %s497 = sld [smem:[#allocation8]]
        %v498 = vld [vmem:[#allocation3] sm:$0xff]
        %v499 = vld [vmem:[#allocation3 + $0x8] sm:$0xff]
        %v500 = vstv %s497
        %v501 = vmul.f32 %v498, %v500
        %v502 = vmul.f32 %v499, %v500
        %v503 = vadd.f32 %v501, 0.0
        %v504 = vadd.f32 %v502, 0.0
        %s505 = sld [smem:[#allocation8 + $0x7]]
        %v506 = vld [vmem:[#allocation3 + $0x1] sm:$0xff]
        %v507 = vld [vmem:[#allocation3 + $0x9] sm:$0xff]
        %v508 = vstv %s505
        %v509 = vmul.f32 %v506, %v508
        %v510 = vmul.f32 %v507, %v508
        %v511 = vadd.f32 %v509, 0.0
        %v512 = vadd.f32 %v510, 0.0
        %s513 = sld [smem:[#allocation8 + $0xe]]
        %v514 = vld [vmem:[#allocation3 + $0x2] sm:$0xff]
        %v515 = vld [vmem:[#allocation3 + $0xa] sm:$0xff]
        %v516 = vstv %s513
        %v517 = vmul.f32 %v514, %v516
        %v518 = vmul.f32 %v515, %v516
        %v519 = vadd.f32 %v503, %v517
        %v520 = vadd.f32 %v504, %v518
        %s521 = sld [smem:[#allocation8 + $0x15]]
        %v522 = vld [vmem:[#allocation3 + $0x3] sm:$0xff]
        %v523 = vld [vmem:[#allocation3 + $0xb] sm:$0xff]
        %v524 = vstv %s521
        %v525 = vmul.f32 %v522, %v524
        %v526 = vmul.f32 %v523, %v524
        %v527 = vadd.f32 %v511, %v525
        %v528 = vadd.f32 %v512, %v526
        %s529 = sld [smem:[#allocation8 + $0x1c]]
        %v530 = vld [vmem:[#allocation3 + $0x4] sm:$0xff]
        %v531 = vld [vmem:[#allocation3 + $0xc] sm:$0xff]
        %v532 = vstv %s529
        %v533 = vmul.f32 %v530, %v532
        %v534 = vmul.f32 %v531, %v532
        %v535 = vadd.f32 %v519, %v533
        %v536 = vadd.f32 %v520, %v534
        %s537 = sld [smem:[#allocation8 + $0x23]]
        %v538 = vld [vmem:[#allocation3 + $0x5] sm:$0xff]
        %v539 = vld [vmem:[#allocation3 + $0xd] sm:$0xff]
        %v540 = vstv %s537
        %v541 = vmul.f32 %v538, %v540
        %v542 = vmul.f32 %v539, %v540
        %v543 = vadd.f32 %v527, %v541
        %v544 = vadd.f32 %v528, %v542
        %s545 = sld [smem:[#allocation8 + $0x2a]]
        %v546 = vld [vmem:[#allocation3 + $0x6] sm:$0xff]
        %v547 = vld [vmem:[#allocation3 + $0xe] sm:$0xff]
        %v548 = vstv %s545
        %v549 = vmul.f32 %v546, %v548
        %v550 = vmul.f32 %v547, %v548
        %v551 = vadd.f32 %v535, %v549
        %v552 = vadd.f32 %v536, %v550
        %s553 = sld [smem:[#allocation8 + $0x1]]
        %v554 = vld [vmem:[%s277] sm:$0xff]
        %v555 = vld [vmem:[%s277 + $0x8] sm:$0xff]
        %v556 = vstv %s553
        %v557 = vmul.f32 %v554, %v556
        %v558 = vmul.f32 %v555, %v556
        %v559 = vadd.f32 %v551, %v557
        %v560 = vadd.f32 %v552, %v558
        %s561 = sld [smem:[#allocation8 + $0x8]]
        %v562 = vld [vmem:[%s277 + $0x1] sm:$0xff]
        %v563 = vld [vmem:[%s277 + $0x9] sm:$0xff]
        %v564 = vstv %s561
        %v565 = vmul.f32 %v562, %v564
        %v566 = vmul.f32 %v563, %v564
        %v567 = vadd.f32 %v543, %v565
        %v568 = vadd.f32 %v544, %v566
        %s569 = sld [smem:[#allocation8 + $0xf]]
        %v570 = vld [vmem:[%s277 + $0x2] sm:$0xff]
        %v571 = vld [vmem:[%s277 + $0xa] sm:$0xff]
        %v572 = vstv %s569
        %v573 = vmul.f32 %v570, %v572
        %v574 = vmul.f32 %v571, %v572
        %v575 = vadd.f32 %v559, %v573
        %v576 = vadd.f32 %v560, %v574
        %s577 = sld [smem:[#allocation8 + $0x16]]
        %v578 = vld [vmem:[%s277 + $0x3] sm:$0xff]
        %v579 = vld [vmem:[%s277 + $0xb] sm:$0xff]
        %v580 = vstv %s577
        %v581 = vmul.f32 %v578, %v580
        %v582 = vmul.f32 %v579, %v580
        %v583 = vadd.f32 %v567, %v581
        %v584 = vadd.f32 %v568, %v582
        %s585 = sld [smem:[#allocation8 + $0x1d]]
        %v586 = vld [vmem:[%s277 + $0x4] sm:$0xff]
        %v587 = vld [vmem:[%s277 + $0xc] sm:$0xff]
        %v588 = vstv %s585
        %v589 = vmul.f32 %v586, %v588
        %v590 = vmul.f32 %v587, %v588
        %v591 = vadd.f32 %v575, %v589
        %v592 = vadd.f32 %v576, %v590
        %s593 = sld [smem:[#allocation8 + $0x24]]
        %v594 = vld [vmem:[%s277 + $0x5] sm:$0xff]
        %v595 = vld [vmem:[%s277 + $0xd] sm:$0xff]
        %v596 = vstv %s593
        %v597 = vmul.f32 %v594, %v596
        %v598 = vmul.f32 %v595, %v596
        %v599 = vadd.f32 %v583, %v597
        %v600 = vadd.f32 %v584, %v598
        %s601 = sld [smem:[#allocation8 + $0x2b]]
        %v602 = vld [vmem:[%s277 + $0x6] sm:$0xff]
        %v603 = vld [vmem:[%s277 + $0xe] sm:$0xff]
        %v604 = vstv %s601
        %v605 = vmul.f32 %v602, %v604
        %v606 = vmul.f32 %v603, %v604
        %v607 = vadd.f32 %v591, %v605
        %v608 = vadd.f32 %v592, %v606
        %s609 = sld [smem:[#allocation8 + $0x2]]
        %v610 = vld [vmem:[%s296] sm:$0xff]
        %v611 = vld [vmem:[%s296 + $0x8] sm:$0xff]
        %v612 = vstv %s609
        %v613 = vmul.f32 %v610, %v612
        %v614 = vmul.f32 %v611, %v612
        %v615 = vadd.f32 %v607, %v613
        %v616 = vadd.f32 %v608, %v614
        %s617 = sld [smem:[#allocation8 + $0x9]]
        %v618 = vld [vmem:[%s296 + $0x1] sm:$0xff]
        %v619 = vld [vmem:[%s296 + $0x9] sm:$0xff]
        %v620 = vstv %s617
        %v621 = vmul.f32 %v618, %v620
        %v622 = vmul.f32 %v619, %v620
        %v623 = vadd.f32 %v599, %v621
        %v624 = vadd.f32 %v600, %v622
        %s625 = sld [smem:[#allocation8 + $0x10]]
        %v626 = vld [vmem:[%s296 + $0x2] sm:$0xff]
        %v627 = vld [vmem:[%s296 + $0xa] sm:$0xff]
        %v628 = vstv %s625
        %v629 = vmul.f32 %v626, %v628
        %v630 = vmul.f32 %v627, %v628
        %v631 = vadd.f32 %v615, %v629
        %v632 = vadd.f32 %v616, %v630
        %s633 = sld [smem:[#allocation8 + $0x17]]
        %v634 = vld [vmem:[%s296 + $0x3] sm:$0xff]
        %v635 = vld [vmem:[%s296 + $0xb] sm:$0xff]
        %v636 = vstv %s633
        %v637 = vmul.f32 %v634, %v636
        %v638 = vmul.f32 %v635, %v636
        %v639 = vadd.f32 %v623, %v637
        %v640 = vadd.f32 %v624, %v638
        %s641 = sld [smem:[#allocation8 + $0x1e]]
        %v642 = vld [vmem:[%s296 + $0x4] sm:$0xff]
        %v643 = vld [vmem:[%s296 + $0xc] sm:$0xff]
        %v644 = vstv %s641
        %v645 = vmul.f32 %v642, %v644
        %v646 = vmul.f32 %v643, %v644
        %v647 = vadd.f32 %v631, %v645
        %v648 = vadd.f32 %v632, %v646
        %s649 = sld [smem:[#allocation8 + $0x25]]
        %v650 = vld [vmem:[%s296 + $0x5] sm:$0xff]
        %v651 = vld [vmem:[%s296 + $0xd] sm:$0xff]
        %v652 = vstv %s649
        %v653 = vmul.f32 %v650, %v652
        %v654 = vmul.f32 %v651, %v652
        %v655 = vadd.f32 %v639, %v653
        %v656 = vadd.f32 %v640, %v654
        %s657 = sld [smem:[#allocation8 + $0x2c]]
        %v658 = vld [vmem:[%s296 + $0x6] sm:$0xff]
        %v659 = vld [vmem:[%s296 + $0xe] sm:$0xff]
        %v660 = vstv %s657
        %v661 = vmul.f32 %v658, %v660
        %v662 = vmul.f32 %v659, %v660
        %v663 = vadd.f32 %v647, %v661
        %v664 = vadd.f32 %v648, %v662
        %s665 = sld [smem:[#allocation8 + $0x3]]
        %v666 = vld [vmem:[%s315] sm:$0xff]
        %v667 = vld [vmem:[%s315 + $0x8] sm:$0xff]
        %v668 = vstv %s665
        %v669 = vmul.f32 %v666, %v668
        %v670 = vmul.f32 %v667, %v668
        %v671 = vadd.f32 %v663, %v669
        %v672 = vadd.f32 %v664, %v670
        %s673 = sld [smem:[#allocation8 + $0xa]]
        %v674 = vld [vmem:[%s315 + $0x1] sm:$0xff]
        %v675 = vld [vmem:[%s315 + $0x9] sm:$0xff]
        %v676 = vstv %s673
        %v677 = vmul.f32 %v674, %v676
        %v678 = vmul.f32 %v675, %v676
        %v679 = vadd.f32 %v655, %v677
        %v680 = vadd.f32 %v656, %v678
        %s681 = sld [smem:[#allocation8 + $0x11]]
        %v682 = vld [vmem:[%s315 + $0x2] sm:$0xff]
        %v683 = vld [vmem:[%s315 + $0xa] sm:$0xff]
        %v684 = vstv %s681
        %v685 = vmul.f32 %v682, %v684
        %v686 = vmul.f32 %v683, %v684
        %v687 = vadd.f32 %v671, %v685
        %v688 = vadd.f32 %v672, %v686
        %s689 = sld [smem:[#allocation8 + $0x18]]
        %v690 = vld [vmem:[%s315 + $0x3] sm:$0xff]
        %v691 = vld [vmem:[%s315 + $0xb] sm:$0xff]
        %v692 = vstv %s689
        %v693 = vmul.f32 %v690, %v692
        %v694 = vmul.f32 %v691, %v692
        %v695 = vadd.f32 %v679, %v693
        %v696 = vadd.f32 %v680, %v694
        %s697 = sld [smem:[#allocation8 + $0x1f]]
        %v698 = vld [vmem:[%s315 + $0x4] sm:$0xff]
        %v699 = vld [vmem:[%s315 + $0xc] sm:$0xff]
        %v700 = vstv %s697
        %v701 = vmul.f32 %v698, %v700
        %v702 = vmul.f32 %v699, %v700
        %v703 = vadd.f32 %v687, %v701
        %v704 = vadd.f32 %v688, %v702
        %s705 = sld [smem:[#allocation8 + $0x26]]
        %v706 = vld [vmem:[%s315 + $0x5] sm:$0xff]
        %v707 = vld [vmem:[%s315 + $0xd] sm:$0xff]
        %v708 = vstv %s705
        %v709 = vmul.f32 %v706, %v708
        %v710 = vmul.f32 %v707, %v708
        %v711 = vadd.f32 %v695, %v709
        %v712 = vadd.f32 %v696, %v710
        %s713 = sld [smem:[#allocation8 + $0x2d]]
        %v714 = vld [vmem:[%s315 + $0x6] sm:$0xff]
        %v715 = vld [vmem:[%s315 + $0xe] sm:$0xff]
        %v716 = vstv %s713
        %v717 = vmul.f32 %v714, %v716
        %v718 = vmul.f32 %v715, %v716
        %v719 = vadd.f32 %v703, %v717
        %v720 = vadd.f32 %v704, %v718
        %s721 = sld [smem:[#allocation8 + $0x4]]
        %v722 = vld [vmem:[%s334] sm:$0xff]
        %v723 = vld [vmem:[%s334 + $0x8] sm:$0xff]
        %v724 = vstv %s721
        %v725 = vmul.f32 %v722, %v724
        %v726 = vmul.f32 %v723, %v724
        %v727 = vadd.f32 %v719, %v725
        %v728 = vadd.f32 %v720, %v726
        %s729 = sld [smem:[#allocation8 + $0xb]]
        %v730 = vld [vmem:[%s334 + $0x1] sm:$0xff]
        %v731 = vld [vmem:[%s334 + $0x9] sm:$0xff]
        %v732 = vstv %s729
        %v733 = vmul.f32 %v730, %v732
        %v734 = vmul.f32 %v731, %v732
        %v735 = vadd.f32 %v711, %v733
        %v736 = vadd.f32 %v712, %v734
        %s737 = sld [smem:[#allocation8 + $0x12]]
        %v738 = vld [vmem:[%s334 + $0x2] sm:$0xff]
        %v739 = vld [vmem:[%s334 + $0xa] sm:$0xff]
        %v740 = vstv %s737
        %v741 = vmul.f32 %v738, %v740
        %v742 = vmul.f32 %v739, %v740
        %v743 = vadd.f32 %v727, %v741
        %v744 = vadd.f32 %v728, %v742
        %s745 = sld [smem:[#allocation8 + $0x19]]
        %v746 = vld [vmem:[%s334 + $0x3] sm:$0xff]
        %v747 = vld [vmem:[%s334 + $0xb] sm:$0xff]
        %v748 = vstv %s745
        %v749 = vmul.f32 %v746, %v748
        %v750 = vmul.f32 %v747, %v748
        %v751 = vadd.f32 %v735, %v749
        %v752 = vadd.f32 %v736, %v750
        %s753 = sld [smem:[#allocation8 + $0x20]]
        %v754 = vld [vmem:[%s334 + $0x4] sm:$0xff]
        %v755 = vld [vmem:[%s334 + $0xc] sm:$0xff]
        %v756 = vstv %s753
        %v757 = vmul.f32 %v754, %v756
        %v758 = vmul.f32 %v755, %v756
        %v759 = vadd.f32 %v743, %v757
        %v760 = vadd.f32 %v744, %v758
        %s761 = sld [smem:[#allocation8 + $0x27]]
        %v762 = vld [vmem:[%s334 + $0x5] sm:$0xff]
        %v763 = vld [vmem:[%s334 + $0xd] sm:$0xff]
        %v764 = vstv %s761
        %v765 = vmul.f32 %v762, %v764
        %v766 = vmul.f32 %v763, %v764
        %v767 = vadd.f32 %v751, %v765
        %v768 = vadd.f32 %v752, %v766
        %s769 = sld [smem:[#allocation8 + $0x2e]]
        %v770 = vld [vmem:[%s334 + $0x6] sm:$0xff]
        %v771 = vld [vmem:[%s334 + $0xe] sm:$0xff]
        %v772 = vstv %s769
        %v773 = vmul.f32 %v770, %v772
        %v774 = vmul.f32 %v771, %v772
        %v775 = vadd.f32 %v759, %v773
        %v776 = vadd.f32 %v760, %v774
        %s777 = sld [smem:[#allocation8 + $0x5]]
        %v778 = vld [vmem:[%s353] sm:$0xff]
        %v779 = vld [vmem:[%s353 + $0x8] sm:$0xff]
        %v780 = vstv %s777
        %v781 = vmul.f32 %v778, %v780
        %v782 = vmul.f32 %v779, %v780
        %v783 = vadd.f32 %v775, %v781
        %v784 = vadd.f32 %v776, %v782
        %s785 = sld [smem:[#allocation8 + $0xc]]
        %v786 = vld [vmem:[%s353 + $0x1] sm:$0xff]
        %v787 = vld [vmem:[%s353 + $0x9] sm:$0xff]
        %v788 = vstv %s785
        %v789 = vmul.f32 %v786, %v788
        %v790 = vmul.f32 %v787, %v788
        %v791 = vadd.f32 %v767, %v789
        %v792 = vadd.f32 %v768, %v790
        %s793 = sld [smem:[#allocation8 + $0x13]]
        %v794 = vld [vmem:[%s353 + $0x2] sm:$0xff]
        %v795 = vld [vmem:[%s353 + $0xa] sm:$0xff]
        %v796 = vstv %s793
        %v797 = vmul.f32 %v794, %v796
        %v798 = vmul.f32 %v795, %v796
        %v799 = vadd.f32 %v783, %v797
        %v800 = vadd.f32 %v784, %v798
        %s801 = sld [smem:[#allocation8 + $0x1a]]
        %v802 = vld [vmem:[%s353 + $0x3] sm:$0xff]
        %v803 = vld [vmem:[%s353 + $0xb] sm:$0xff]
        %v804 = vstv %s801
        %v805 = vmul.f32 %v802, %v804
        %v806 = vmul.f32 %v803, %v804
        %v807 = vadd.f32 %v791, %v805
        %v808 = vadd.f32 %v792, %v806
        %s809 = sld [smem:[#allocation8 + $0x21]]
        %v810 = vld [vmem:[%s353 + $0x4] sm:$0xff]
        %v811 = vld [vmem:[%s353 + $0xc] sm:$0xff]
        %v812 = vstv %s809
        %v813 = vmul.f32 %v810, %v812
        %v814 = vmul.f32 %v811, %v812
        %v815 = vadd.f32 %v799, %v813
        %v816 = vadd.f32 %v800, %v814
        %s817 = sld [smem:[#allocation8 + $0x28]]
        %v818 = vld [vmem:[%s353 + $0x5] sm:$0xff]
        %v819 = vld [vmem:[%s353 + $0xd] sm:$0xff]
        %v820 = vstv %s817
        %v821 = vmul.f32 %v818, %v820
        %v822 = vmul.f32 %v819, %v820
        %v823 = vadd.f32 %v807, %v821
        %v824 = vadd.f32 %v808, %v822
        %s825 = sld [smem:[#allocation8 + $0x2f]]
        %v826 = vld [vmem:[%s353 + $0x6] sm:$0xff]
        %v827 = vld [vmem:[%s353 + $0xe] sm:$0xff]
        %v828 = vstv %s825
        %v829 = vmul.f32 %v826, %v828
        %v830 = vmul.f32 %v827, %v828
        %v831 = vadd.f32 %v815, %v829
        %v832 = vadd.f32 %v816, %v830
        %s833 = sld [smem:[#allocation8 + $0x6]]
        %v834 = vld [vmem:[%s372] sm:$0xff]
        %v835 = vld [vmem:[%s372 + $0x8] sm:$0xff]
        %v836 = vstv %s833
        %v837 = vmul.f32 %v834, %v836
        %v838 = vmul.f32 %v835, %v836
        %v839 = vadd.f32 %v831, %v837
        %v840 = vadd.f32 %v832, %v838
        %s841 = sld [smem:[#allocation8 + $0xd]]
        %v842 = vld [vmem:[%s372 + $0x1] sm:$0xff]
        %v843 = vld [vmem:[%s372 + $0x9] sm:$0xff]
        %v844 = vstv %s841
        %v845 = vmul.f32 %v842, %v844
        %v846 = vmul.f32 %v843, %v844
        %v847 = vadd.f32 %v823, %v845
        %v848 = vadd.f32 %v824, %v846
        %s849 = sld [smem:[#allocation8 + $0x14]]
        %v850 = vld [vmem:[%s372 + $0x2] sm:$0xff]
        %v851 = vld [vmem:[%s372 + $0xa] sm:$0xff]
        %v852 = vstv %s849
        %v853 = vmul.f32 %v850, %v852
        %v854 = vmul.f32 %v851, %v852
        %v855 = vadd.f32 %v839, %v853
        %v856 = vadd.f32 %v840, %v854
        %s857 = sld [smem:[#allocation8 + $0x1b]]
        %v858 = vld [vmem:[%s372 + $0x3] sm:$0xff]
        %v859 = vld [vmem:[%s372 + $0xb] sm:$0xff]
        %v860 = vstv %s857
        %v861 = vmul.f32 %v858, %v860
        %v862 = vmul.f32 %v859, %v860
        %v863 = vadd.f32 %v847, %v861
        %v864 = vadd.f32 %v848, %v862
        %s865 = sld [smem:[#allocation8 + $0x22]]
        %v866 = vld [vmem:[%s372 + $0x4] sm:$0xff]
        %v867 = vld [vmem:[%s372 + $0xc] sm:$0xff]
        %v868 = vstv %s865
        %v869 = vmul.f32 %v866, %v868
        %v870 = vmul.f32 %v867, %v868
        %v871 = vadd.f32 %v855, %v869
        %v872 = vadd.f32 %v856, %v870
        %s873 = sld [smem:[#allocation8 + $0x29]]
        %v874 = vld [vmem:[%s372 + $0x5] sm:$0xff]
        %v875 = vld [vmem:[%s372 + $0xd] sm:$0xff]
        %v876 = vstv %s873
        %v877 = vmul.f32 %v874, %v876
        %v878 = vmul.f32 %v875, %v876
        %v879 = vadd.f32 %v863, %v877
        %v880 = vadd.f32 %v864, %v878
        %s881 = sld [smem:[#allocation8 + $0x30]]
        %v882 = vld [vmem:[%s372 + $0x6] sm:$0xff]
        %v883 = vld [vmem:[%s372 + $0xe] sm:$0xff]
        %v884 = vstv %s881
        %v885 = vmul.f32 %v882, %v884
        %v886 = vmul.f32 %v883, %v884
        %v887 = vadd.f32 %v871, %v885
        %v888 = vadd.f32 %v872, %v886
        %s889 = sld [smem:[#allocation8 + $0x31]]
        %v890 = vld [vmem:[%s379] sm:$0xff]
        %v891 = vld [vmem:[%s379 + $0x8] sm:$0xff]
        %v892 = vstv %s889
        %v893 = vmul.f32 %v890, %v892
        %v894 = vmul.f32 %v891, %v892
        %v895 = vadd.f32 %v893, 0.0
        %v896 = vadd.f32 %v894, 0.0
        %s897 = sld [smem:[#allocation8 + $0x38]]
        %v898 = vld [vmem:[%s379 + $0x1] sm:$0xff]
        %v899 = vld [vmem:[%s379 + $0x9] sm:$0xff]
        %v900 = vstv %s897
        %v901 = vmul.f32 %v898, %v900
        %v902 = vmul.f32 %v899, %v900
        %v903 = vadd.f32 %v901, 0.0
        %v904 = vadd.f32 %v902, 0.0
        %s905 = sld [smem:[#allocation8 + $0x3f]]
        %v906 = vld [vmem:[%s379 + $0x2] sm:$0xff]
        %v907 = vld [vmem:[%s379 + $0xa] sm:$0xff]
        %v908 = vstv %s905
        %v909 = vmul.f32 %v906, %v908
        %v910 = vmul.f32 %v907, %v908
        %v911 = vadd.f32 %v895, %v909
        %v912 = vadd.f32 %v896, %v910
        %s913 = sld [smem:[#allocation8 + $0x46]]
        %v914 = vld [vmem:[%s379 + $0x3] sm:$0xff]
        %v915 = vld [vmem:[%s379 + $0xb] sm:$0xff]
        %v916 = vstv %s913
        %v917 = vmul.f32 %v914, %v916
        %v918 = vmul.f32 %v915, %v916
        %v919 = vadd.f32 %v903, %v917
        %v920 = vadd.f32 %v904, %v918
        %s921 = sld [smem:[#allocation8 + $0x4d]]
        %v922 = vld [vmem:[%s379 + $0x4] sm:$0xff]
        %v923 = vld [vmem:[%s379 + $0xc] sm:$0xff]
        %v924 = vstv %s921
        %v925 = vmul.f32 %v922, %v924
        %v926 = vmul.f32 %v923, %v924
        %v927 = vadd.f32 %v911, %v925
        %v928 = vadd.f32 %v912, %v926
        %s929 = sld [smem:[#allocation8 + $0x54]]
        %v930 = vld [vmem:[%s379 + $0x5] sm:$0xff]
        %v931 = vld [vmem:[%s379 + $0xd] sm:$0xff]
        %v932 = vstv %s929
        %v933 = vmul.f32 %v930, %v932
        %v934 = vmul.f32 %v931, %v932
        %v935 = vadd.f32 %v919, %v933
        %v936 = vadd.f32 %v920, %v934
        %s937 = sld [smem:[#allocation8 + $0x5b]]
        %v938 = vld [vmem:[%s379 + $0x6] sm:$0xff]
        %v939 = vld [vmem:[%s379 + $0xe] sm:$0xff]
        %v940 = vstv %s937
        %v941 = vmul.f32 %v938, %v940
        %v942 = vmul.f32 %v939, %v940
        %v943 = vadd.f32 %v927, %v941
        %v944 = vadd.f32 %v928, %v942
        %s945 = sld [smem:[#allocation8 + $0x32]]
        %v946 = vld [vmem:[%s398] sm:$0xff]
        %v947 = vld [vmem:[%s398 + $0x8] sm:$0xff]
        %v948 = vstv %s945
        %v949 = vmul.f32 %v946, %v948
        %v950 = vmul.f32 %v947, %v948
        %v951 = vadd.f32 %v943, %v949
        %v952 = vadd.f32 %v944, %v950
        %s953 = sld [smem:[#allocation8 + $0x39]]
        %v954 = vld [vmem:[%s398 + $0x1] sm:$0xff]
        %v955 = vld [vmem:[%s398 + $0x9] sm:$0xff]
        %v956 = vstv %s953
        %v957 = vmul.f32 %v954, %v956
        %v958 = vmul.f32 %v955, %v956
        %v959 = vadd.f32 %v935, %v957
        %v960 = vadd.f32 %v936, %v958
        %s961 = sld [smem:[#allocation8 + $0x40]]
        %v962 = vld [vmem:[%s398 + $0x2] sm:$0xff]
        %v963 = vld [vmem:[%s398 + $0xa] sm:$0xff]
        %v964 = vstv %s961
        %v965 = vmul.f32 %v962, %v964
        %v966 = vmul.f32 %v963, %v964
        %v967 = vadd.f32 %v951, %v965
        %v968 = vadd.f32 %v952, %v966
        %s969 = sld [smem:[#allocation8 + $0x47]]
        %v970 = vld [vmem:[%s398 + $0x3] sm:$0xff]
        %v971 = vld [vmem:[%s398 + $0xb] sm:$0xff]
        %v972 = vstv %s969
        %v973 = vmul.f32 %v970, %v972
        %v974 = vmul.f32 %v971, %v972
        %v975 = vadd.f32 %v959, %v973
        %v976 = vadd.f32 %v960, %v974
        %s977 = sld [smem:[#allocation8 + $0x4e]]
        %v978 = vld [vmem:[%s398 + $0x4] sm:$0xff]
        %v979 = vld [vmem:[%s398 + $0xc] sm:$0xff]
        %v980 = vstv %s977
        %v981 = vmul.f32 %v978, %v980
        %v982 = vmul.f32 %v979, %v980
        %v983 = vadd.f32 %v967, %v981
        %v984 = vadd.f32 %v968, %v982
        %s985 = sld [smem:[#allocation8 + $0x55]]
        %v986 = vld [vmem:[%s398 + $0x5] sm:$0xff]
        %v987 = vld [vmem:[%s398 + $0xd] sm:$0xff]
        %v988 = vstv %s985
        %v989 = vmul.f32 %v986, %v988
        %v990 = vmul.f32 %v987, %v988
        %v991 = vadd.f32 %v975, %v989
        %v992 = vadd.f32 %v976, %v990
        %s993 = sld [smem:[#allocation8 + $0x5c]]
        %v994 = vld [vmem:[%s398 + $0x6] sm:$0xff]
        %v995 = vld [vmem:[%s398 + $0xe] sm:$0xff]
        %v996 = vstv %s993
        %v997 = vmul.f32 %v994, %v996
        %v998 = vmul.f32 %v995, %v996
        %v999 = vadd.f32 %v983, %v997
        %v1000 = vadd.f32 %v984, %v998
        %s1001 = sld [smem:[#allocation8 + $0x33]]
        %v1002 = vld [vmem:[%s417] sm:$0xff]
        %v1003 = vld [vmem:[%s417 + $0x8] sm:$0xff]
        %v1004 = vstv %s1001
        %v1005 = vmul.f32 %v1002, %v1004
        %v1006 = vmul.f32 %v1003, %v1004
        %v1007 = vadd.f32 %v999, %v1005
        %v1008 = vadd.f32 %v1000, %v1006
        %s1009 = sld [smem:[#allocation8 + $0x3a]]
        %v1010 = vld [vmem:[%s417 + $0x1] sm:$0xff]
        %v1011 = vld [vmem:[%s417 + $0x9] sm:$0xff]
        %v1012 = vstv %s1009
        %v1013 = vmul.f32 %v1010, %v1012
        %v1014 = vmul.f32 %v1011, %v1012
        %v1015 = vadd.f32 %v991, %v1013
        %v1016 = vadd.f32 %v992, %v1014
        %s1017 = sld [smem:[#allocation8 + $0x41]]
        %v1018 = vld [vmem:[%s417 + $0x2] sm:$0xff]
        %v1019 = vld [vmem:[%s417 + $0xa] sm:$0xff]
        %v1020 = vstv %s1017
        %v1021 = vmul.f32 %v1018, %v1020
        %v1022 = vmul.f32 %v1019, %v1020
        %v1023 = vadd.f32 %v1007, %v1021
        %v1024 = vadd.f32 %v1008, %v1022
        %s1025 = sld [smem:[#allocation8 + $0x48]]
        %v1026 = vld [vmem:[%s417 + $0x3] sm:$0xff]
        %v1027 = vld [vmem:[%s417 + $0xb] sm:$0xff]
        %v1028 = vstv %s1025
        %v1029 = vmul.f32 %v1026, %v1028
        %v1030 = vmul.f32 %v1027, %v1028
        %v1031 = vadd.f32 %v1015, %v1029
        %v1032 = vadd.f32 %v1016, %v1030
        %s1033 = sld [smem:[#allocation8 + $0x4f]]
        %v1034 = vld [vmem:[%s417 + $0x4] sm:$0xff]
        %v1035 = vld [vmem:[%s417 + $0xc] sm:$0xff]
        %v1036 = vstv %s1033
        %v1037 = vmul.f32 %v1034, %v1036
        %v1038 = vmul.f32 %v1035, %v1036
        %v1039 = vadd.f32 %v1023, %v1037
        %v1040 = vadd.f32 %v1024, %v1038
        %s1041 = sld [smem:[#allocation8 + $0x56]]
        %v1042 = vld [vmem:[%s417 + $0x5] sm:$0xff]
        %v1043 = vld [vmem:[%s417 + $0xd] sm:$0xff]
        %v1044 = vstv %s1041
        %v1045 = vmul.f32 %v1042, %v1044
        %v1046 = vmul.f32 %v1043, %v1044
        %v1047 = vadd.f32 %v1031, %v1045
        %v1048 = vadd.f32 %v1032, %v1046
        %s1049 = sld [smem:[#allocation8 + $0x5d]]
        %v1050 = vld [vmem:[%s417 + $0x6] sm:$0xff]
        %v1051 = vld [vmem:[%s417 + $0xe] sm:$0xff]
        %v1052 = vstv %s1049
        %v1053 = vmul.f32 %v1050, %v1052
        %v1054 = vmul.f32 %v1051, %v1052
        %v1055 = vadd.f32 %v1039, %v1053
        %v1056 = vadd.f32 %v1040, %v1054
        %s1057 = sld [smem:[#allocation8 + $0x34]]
        %v1058 = vld [vmem:[%s436] sm:$0xff]
        %v1059 = vld [vmem:[%s436 + $0x8] sm:$0xff]
        %v1060 = vstv %s1057
        %v1061 = vmul.f32 %v1058, %v1060
        %v1062 = vmul.f32 %v1059, %v1060
        %v1063 = vadd.f32 %v1055, %v1061
        %v1064 = vadd.f32 %v1056, %v1062
        %s1065 = sld [smem:[#allocation8 + $0x3b]]
        %v1066 = vld [vmem:[%s436 + $0x1] sm:$0xff]
        %v1067 = vld [vmem:[%s436 + $0x9] sm:$0xff]
        %v1068 = vstv %s1065
        %v1069 = vmul.f32 %v1066, %v1068
        %v1070 = vmul.f32 %v1067, %v1068
        %v1071 = vadd.f32 %v1047, %v1069
        %v1072 = vadd.f32 %v1048, %v1070
        %s1073 = sld [smem:[#allocation8 + $0x42]]
        %v1074 = vld [vmem:[%s436 + $0x2] sm:$0xff]
        %v1075 = vld [vmem:[%s436 + $0xa] sm:$0xff]
        %v1076 = vstv %s1073
        %v1077 = vmul.f32 %v1074, %v1076
        %v1078 = vmul.f32 %v1075, %v1076
        %v1079 = vadd.f32 %v1063, %v1077
        %v1080 = vadd.f32 %v1064, %v1078
        %s1081 = sld [smem:[#allocation8 + $0x49]]
        %v1082 = vld [vmem:[%s436 + $0x3] sm:$0xff]
        %v1083 = vld [vmem:[%s436 + $0xb] sm:$0xff]
        %v1084 = vstv %s1081
        %v1085 = vmul.f32 %v1082, %v1084
        %v1086 = vmul.f32 %v1083, %v1084
        %v1087 = vadd.f32 %v1071, %v1085
        %v1088 = vadd.f32 %v1072, %v1086
        %s1089 = sld [smem:[#allocation8 + $0x50]]
        %v1090 = vld [vmem:[%s436 + $0x4] sm:$0xff]
        %v1091 = vld [vmem:[%s436 + $0xc] sm:$0xff]
        %v1092 = vstv %s1089
        %v1093 = vmul.f32 %v1090, %v1092
        %v1094 = vmul.f32 %v1091, %v1092
        %v1095 = vadd.f32 %v1079, %v1093
        %v1096 = vadd.f32 %v1080, %v1094
        %s1097 = sld [smem:[#allocation8 + $0x57]]
        %v1098 = vld [vmem:[%s436 + $0x5] sm:$0xff]
        %v1099 = vld [vmem:[%s436 + $0xd] sm:$0xff]
        %v1100 = vstv %s1097
        %v1101 = vmul.f32 %v1098, %v1100
        %v1102 = vmul.f32 %v1099, %v1100
        %v1103 = vadd.f32 %v1087, %v1101
        %v1104 = vadd.f32 %v1088, %v1102
        %s1105 = sld [smem:[#allocation8 + $0x5e]]
        %v1106 = vld [vmem:[%s436 + $0x6] sm:$0xff]
        %v1107 = vld [vmem:[%s436 + $0xe] sm:$0xff]
        %v1108 = vstv %s1105
        %v1109 = vmul.f32 %v1106, %v1108
        %v1110 = vmul.f32 %v1107, %v1108
        %v1111 = vadd.f32 %v1095, %v1109
        %v1112 = vadd.f32 %v1096, %v1110
        %s1113 = sld [smem:[#allocation8 + $0x35]]
        %v1114 = vld [vmem:[%s455] sm:$0xff]
        %v1115 = vld [vmem:[%s455 + $0x8] sm:$0xff]
        %v1116 = vstv %s1113
        %v1117 = vmul.f32 %v1114, %v1116
        %v1118 = vmul.f32 %v1115, %v1116
        %v1119 = vadd.f32 %v1111, %v1117
        %v1120 = vadd.f32 %v1112, %v1118
        %s1121 = sld [smem:[#allocation8 + $0x3c]]
        %v1122 = vld [vmem:[%s455 + $0x1] sm:$0xff]
        %v1123 = vld [vmem:[%s455 + $0x9] sm:$0xff]
        %v1124 = vstv %s1121
        %v1125 = vmul.f32 %v1122, %v1124
        %v1126 = vmul.f32 %v1123, %v1124
        %v1127 = vadd.f32 %v1103, %v1125
        %v1128 = vadd.f32 %v1104, %v1126
        %s1129 = sld [smem:[#allocation8 + $0x43]]
        %v1130 = vld [vmem:[%s455 + $0x2] sm:$0xff]
        %v1131 = vld [vmem:[%s455 + $0xa] sm:$0xff]
        %v1132 = vstv %s1129
        %v1133 = vmul.f32 %v1130, %v1132
        %v1134 = vmul.f32 %v1131, %v1132
        %v1135 = vadd.f32 %v1119, %v1133
        %v1136 = vadd.f32 %v1120, %v1134
        %s1137 = sld [smem:[#allocation8 + $0x4a]]
        %v1138 = vld [vmem:[%s455 + $0x3] sm:$0xff]
        %v1139 = vld [vmem:[%s455 + $0xb] sm:$0xff]
        %v1140 = vstv %s1137
        %v1141 = vmul.f32 %v1138, %v1140
        %v1142 = vmul.f32 %v1139, %v1140
        %v1143 = vadd.f32 %v1127, %v1141
        %v1144 = vadd.f32 %v1128, %v1142
        %s1145 = sld [smem:[#allocation8 + $0x51]]
        %v1146 = vld [vmem:[%s455 + $0x4] sm:$0xff]
        %v1147 = vld [vmem:[%s455 + $0xc] sm:$0xff]
        %v1148 = vstv %s1145
        %v1149 = vmul.f32 %v1146, %v1148
        %v1150 = vmul.f32 %v1147, %v1148
        %v1151 = vadd.f32 %v1135, %v1149
        %v1152 = vadd.f32 %v1136, %v1150
        %s1153 = sld [smem:[#allocation8 + $0x58]]
        %v1154 = vld [vmem:[%s455 + $0x5] sm:$0xff]
        %v1155 = vld [vmem:[%s455 + $0xd] sm:$0xff]
        %v1156 = vstv %s1153
        %v1157 = vmul.f32 %v1154, %v1156
        %v1158 = vmul.f32 %v1155, %v1156
        %v1159 = vadd.f32 %v1143, %v1157
        %v1160 = vadd.f32 %v1144, %v1158
        %s1161 = sld [smem:[#allocation8 + $0x5f]]
        %v1162 = vld [vmem:[%s455 + $0x6] sm:$0xff]
        %v1163 = vld [vmem:[%s455 + $0xe] sm:$0xff]
        %v1164 = vstv %s1161
        %v1165 = vmul.f32 %v1162, %v1164
        %v1166 = vmul.f32 %v1163, %v1164
        %v1167 = vadd.f32 %v1151, %v1165
        %v1168 = vadd.f32 %v1152, %v1166
        %s1169 = sld [smem:[#allocation8 + $0x36]]
        %v1170 = vld [vmem:[%s474] sm:$0xff]
        %v1171 = vld [vmem:[%s474 + $0x8] sm:$0xff]
        %v1172 = vstv %s1169
        %v1173 = vmul.f32 %v1170, %v1172
        %v1174 = vmul.f32 %v1171, %v1172
        %v1175 = vadd.f32 %v1167, %v1173
        %v1176 = vadd.f32 %v1168, %v1174
        %s1177 = sld [smem:[#allocation8 + $0x3d]]
        %v1178 = vld [vmem:[%s474 + $0x1] sm:$0xff]
        %v1179 = vld [vmem:[%s474 + $0x9] sm:$0xff]
        %v1180 = vstv %s1177
        %v1181 = vmul.f32 %v1178, %v1180
        %v1182 = vmul.f32 %v1179, %v1180
        %v1183 = vadd.f32 %v1159, %v1181
        %v1184 = vadd.f32 %v1160, %v1182
        %s1185 = sld [smem:[#allocation8 + $0x44]]
        %v1186 = vld [vmem:[%s474 + $0x2] sm:$0xff]
        %v1187 = vld [vmem:[%s474 + $0xa] sm:$0xff]
        %v1188 = vstv %s1185
        %v1189 = vmul.f32 %v1186, %v1188
        %v1190 = vmul.f32 %v1187, %v1188
        %v1191 = vadd.f32 %v1175, %v1189
        %v1192 = vadd.f32 %v1176, %v1190
        %s1193 = sld [smem:[#allocation8 + $0x4b]]
        %v1194 = vld [vmem:[%s474 + $0x3] sm:$0xff]
        %v1195 = vld [vmem:[%s474 + $0xb] sm:$0xff]
        %v1196 = vstv %s1193
        %v1197 = vmul.f32 %v1194, %v1196
        %v1198 = vmul.f32 %v1195, %v1196
        %v1199 = vadd.f32 %v1183, %v1197
        %v1200 = vadd.f32 %v1184, %v1198
        %s1201 = sld [smem:[#allocation8 + $0x52]]
        %v1202 = vld [vmem:[%s474 + $0x4] sm:$0xff]
        %v1203 = vld [vmem:[%s474 + $0xc] sm:$0xff]
        %v1204 = vstv %s1201
        %v1205 = vmul.f32 %v1202, %v1204
        %v1206 = vmul.f32 %v1203, %v1204
        %v1207 = vadd.f32 %v1191, %v1205
        %v1208 = vadd.f32 %v1192, %v1206
        %s1209 = sld [smem:[#allocation8 + $0x59]]
        %v1210 = vld [vmem:[%s474 + $0x5] sm:$0xff]
        %v1211 = vld [vmem:[%s474 + $0xd] sm:$0xff]
        %v1212 = vstv %s1209
        %v1213 = vmul.f32 %v1210, %v1212
        %v1214 = vmul.f32 %v1211, %v1212
        %v1215 = vadd.f32 %v1199, %v1213
        %v1216 = vadd.f32 %v1200, %v1214
        %s1217 = sld [smem:[#allocation8 + $0x60]]
        %v1218 = vld [vmem:[%s474 + $0x6] sm:$0xff]
        %v1219 = vld [vmem:[%s474 + $0xe] sm:$0xff]
        %v1220 = vstv %s1217
        %v1221 = vmul.f32 %v1218, %v1220
        %v1222 = vmul.f32 %v1219, %v1220
        %v1223 = vadd.f32 %v1207, %v1221
        %v1224 = vadd.f32 %v1208, %v1222
        %s1225 = sld [smem:[#allocation8 + $0x37]]
        %v1226 = vld [vmem:[%s493] sm:$0xff]
        %v1227 = vld [vmem:[%s493 + $0x8] sm:$0xff]
        %v1228 = vstv %s1225
        %v1229 = vmul.f32 %v1226, %v1228
        %v1230 = vmul.f32 %v1227, %v1228
        %v1231 = vadd.f32 %v1223, %v1229
        %v1232 = vadd.f32 %v1224, %v1230
        %s1233 = sld [smem:[#allocation8 + $0x3e]]
        %v1234 = vld [vmem:[%s493 + $0x1] sm:$0xff]
        %v1235 = vld [vmem:[%s493 + $0x9] sm:$0xff]
        %v1236 = vstv %s1233
        %v1237 = vmul.f32 %v1234, %v1236
        %v1238 = vmul.f32 %v1235, %v1236
        %v1239 = vadd.f32 %v1215, %v1237
        %v1240 = vadd.f32 %v1216, %v1238
        %s1241 = sld [smem:[#allocation8 + $0x45]]
        %v1242 = vld [vmem:[%s493 + $0x2] sm:$0xff]
        %v1243 = vld [vmem:[%s493 + $0xa] sm:$0xff]
        %v1244 = vstv %s1241
        %v1245 = vmul.f32 %v1242, %v1244
        %v1246 = vmul.f32 %v1243, %v1244
        %v1247 = vadd.f32 %v1231, %v1245
        %v1248 = vadd.f32 %v1232, %v1246
        %s1249 = sld [smem:[#allocation8 + $0x4c]]
        %v1250 = vld [vmem:[%s493 + $0x3] sm:$0xff]
        %v1251 = vld [vmem:[%s493 + $0xb] sm:$0xff]
        %v1252 = vstv %s1249
        %v1253 = vmul.f32 %v1250, %v1252
        %v1254 = vmul.f32 %v1251, %v1252
        %v1255 = vadd.f32 %v1239, %v1253
        %v1256 = vadd.f32 %v1240, %v1254
        %s1257 = sld [smem:[#allocation8 + $0x53]]
        %v1258 = vld [vmem:[%s493 + $0x4] sm:$0xff]
        %v1259 = vld [vmem:[%s493 + $0xc] sm:$0xff]
        %v1260 = vstv %s1257
        %v1261 = vmul.f32 %v1258, %v1260
        %v1262 = vmul.f32 %v1259, %v1260
        %v1263 = vadd.f32 %v1247, %v1261
        %v1264 = vadd.f32 %v1248, %v1262
        %s1265 = sld [smem:[#allocation8 + $0x5a]]
        %v1266 = vld [vmem:[%s493 + $0x5] sm:$0xff]
        %v1267 = vld [vmem:[%s493 + $0xd] sm:$0xff]
        %v1268 = vstv %s1265
        %v1269 = vmul.f32 %v1266, %v1268
        %v1270 = vmul.f32 %v1267, %v1268
        %v1271 = vadd.f32 %v1255, %v1269
        %v1272 = vadd.f32 %v1256, %v1270
        %s1273 = sld [smem:[#allocation8 + $0x61]]
        %v1274 = vld [vmem:[%s493 + $0x6] sm:$0xff]
        %v1275 = vld [vmem:[%s493 + $0xe] sm:$0xff]
        %v1276 = vstv %s1273
        %v1277 = vmul.f32 %v1274, %v1276
        %v1278 = vmul.f32 %v1275, %v1276
        %v1279 = vadd.f32 %v1263, %v1277
        %v1280 = vadd.f32 %v1264, %v1278
        %v1281 = vadd.f32 %v887, %v879
        %v1282 = vadd.f32 %v888, %v880
        %v1283 = vadd.f32 %v1279, %v1271
        %v1284 = vadd.f32 %v1280, %v1272
        %v1285 = vadd.f32 %v1281, %v1283
        %v1286 = vadd.f32 %v1282, %v1284
        %s1287 = sld [smem:[#allocation8 + $0x62]]
        %v1288 = vstv %s1287
        %v1289 = vadd.f32 %v1285, %v1288
        %v1290 = vadd.f32 %v1286, %v1288
        %1291 = vst.msk [vmem:[%s192] sm:$0xff] %vm257, %v1289
        %1292 = vst.msk [vmem:[%s192 + $0x8] sm:$0xff] %vm257, %v1290
        %s1293 = sand.u32 %s89, 1
        %s1294 = scalar_lea.sflag [#allocation6], %s1293
        %s1295 = sand.u32 %s89, 1
        %s1296 = smul.addr %s1295, 16
        %s1297 = scalar_lea.vmem [#allocation9], %s1296
        // Predicated region
        $region37: #{tpu_custom_call.1} parent=27 // pred_check
          %p1298 = pneg %p99
        $region38: #{tpu_custom_call.1} parent=27 // pred_check_branch
          %1300 = sbr.rel (%p1298) target = $region40
        $region39: #{tpu_custom_call.1} parent=27 // pred_region
          %s1302 = ssub.s32 256, 256
          %1303 = vsyncadd %s1294, %s1302
          %s1304 = smul.addr %s24, 2
          %s1305 = smul.addr %s1304, 128
          %s1306 = scalar_lea.hbm %s2, %s1305
          %s1307 = sshll.u32 %s1297, 4
          %s1308 = int_to_ptr.vmem [resolvable:$true] %s1307
          %1313 = dma.vmem_to_hbm [thread:$0]  %s1308, 256, %s1306, %s1294, 128, 128, 8
        $region40: #{tpu_custom_call.1} parent=27 // pred_fallthru
          _
      $region28: #{tpu_custom_call.1} parent=5 // pred_fallthru
        _
      %p1314 = scmp.le.s32.totalorder 2, %s15
      // Predicated region
      $region41: #{tpu_custom_call.1} parent=5 // pred_check
        %p1315 = pneg %p1314
      $region42: #{tpu_custom_call.1} parent=5 // pred_check_branch
        %1317 = sbr.rel (%p1315) target = $region44
      $region43: #{tpu_custom_call.1} parent=5 // pred_region
        %s1318 = ssub.s32 %s15, 2
        // Predicated region
        $region45: #{tpu_custom_call.1} parent=43 // pred_check
          %p1319 = pneg %p105
        $region46: #{tpu_custom_call.1} parent=43 // pred_check_branch
          %1321 = sbr.rel (%p1319) target = $region48
        $region47: #{tpu_custom_call.1} parent=43 // pred_region
          %s1322 = sand.u32 %s90, 1
          %s1323 = scalar_lea.sflag [#allocation6], %s1322
          %s1324 = sand.u32 %s90, 1
          %s1325 = smul.addr %s1324, 16
          %s1326 = scalar_lea.vmem [#allocation9], %s1325
          %1327 = dma.done %s1323, 256
        $region48: #{tpu_custom_call.1} parent=43 // pred_fallthru
          _
      $region44: #{tpu_custom_call.1} parent=5 // pred_fallthru
        _
    $region6: #{tpu_custom_call.1} parent=1 // loop_footer
      %s19 = sadd.s32 1, %s15
    $region7: #{tpu_custom_call.1} parent=1 // loop_footer_branch
      %14 = sbr.rel target = $region3
    $region8: #{tpu_custom_call.1} parent=1 // loop_exit
      _
    %1328 = vsyncpa [#allocation5], 1
    %s1329 = scalar_lea.sflag [#allocation5], 1
    %1330 = vsyncpa %s1329, 1
    %1331 = vsyncpa [#allocation6], 1
    %s1332 = scalar_lea.sflag [#allocation6], 1
    %1333 = vsyncpa %s1332, 1
    %1334 = vsyncpa [#allocation7], 1
    %s1335 = scalar_lea.sflag [#allocation7], 1
    %1336 = vsyncpa %s1335, 1

</llo_original>
